<compile_context>
chip_gen: v7x
topology: tpu7x:2x2x1
jax: 0.10.0
libtpu: 0.0.40
codegen_flags: <defaults>
</compile_context>

<pallas_src>
import math

import jax
import jax.numpy as jnp
from jax.experimental import pallas as pl
from jax.experimental.pallas import tpu as pltpu


def lstm_kernel(x_ref, w_ih_ref, b_ref, w_hh_hbm, w_lin_hbm, b_lin_ref,
                out_ref, gates_ref, w_hh_ref, w_lin_ref, dma_sem):
    T, B, K = x_ref.shape           # padded shapes (static)
    H = w_hh_ref.shape[0]

    # Kick off the recurrence/head weight DMAs so they overlap the batched
    # input-projection matmul below (otherwise they are fully exposed).
    cp_hh = pltpu.make_async_copy(w_hh_hbm, w_hh_ref, dma_sem.at[0])
    cp_lin = pltpu.make_async_copy(w_lin_hbm, w_lin_ref, dma_sem.at[1])
    cp_hh.start()
    cp_lin.start()

    # --- One MXU call for the input projection of ALL timesteps; bias folded
    #     in once (outside the serial loop). ---
    x_all = x_ref[...].reshape(T * B, K)                      # (T*B, K)
    gx = jnp.dot(x_all, w_ih_ref[...],
                 preferred_element_type=jnp.float32) + b_ref[...]
    gates_ref[...] = gx.reshape(T, B, 4 * H)                  # (T, B, 4H)

    cp_hh.wait()                    # w_hh resident in VMEM before recurrence

    h0 = jnp.zeros((B, H), jnp.float32)
    c0 = jnp.zeros((B, H), jnp.float32)

    def step(t, carry):
        h, c = carry
        # Loop-invariant RHS consumed straight from VMEM each step (no
        # 64-vreg w_hh value held live across the unrolled loop).
        # TODO(synk): go fully weight-stationary (pltpu.matmul_push_rhs once +
        # matmul_acc_lhs/matmul_pop per step) to avoid re-pushing w_hh into
        # the MXU on each of the T serial steps.
        g = gates_ref[t] + jnp.dot(h, w_hh_ref[...],
                                   preferred_element_type=jnp.float32)
        # Gate layout was permuted at init to [i, f, o, g]: sigmoid on one
        # contiguous (B, 3H) slab, tanh on the trailing (B, H) slab.
        sg = jax.nn.sigmoid(g[:, :3 * H])
        g_g = jnp.tanh(g[:, 3 * H:])
        i_g = sg[:, 0:H]
        f_g = sg[:, H:2 * H]
        o_g = sg[:, 2 * H:3 * H]
        c = f_g * c + i_g * g_g
        h = o_g * jnp.tanh(c)
        return (h, c)

    # seq_len is small & static -> fully unrolled for LLO scheduler visibility.
    h, _ = jax.lax.fori_loop(0, T, step, (h0, c0), unroll=True)

    cp_lin.wait()                   # head weights resident before final GEMM

    # Fused final Linear on the last hidden state (lane-dense, padded output).
    out_ref[...] = (jnp.dot(h, w_lin_ref[...],
                            preferred_element_type=jnp.float32)
                    + b_lin_ref[...]).astype(out_ref.dtype)


def _round_up(n, m):
    return ((n + m - 1) // m) * m


def prepare_params(w_ih, w_hh, b, w_lin, b_lin):
    """One-time weight prep (hoisted out of the per-call path):
    permute gate columns [i, f, g, o] -> [i, f, o, g] and pad to
    lane/sublane-friendly shapes."""
    K, four_h = w_ih.shape
    H = four_h // 4
    out_size = w_lin.shape[1]

    def perm_gates(m):
        return jnp.concatenate(
            [m[..., 0:2 * H], m[..., 3 * H:4 * H], m[..., 2 * H:3 * H]],
            axis=-1)

    w_ih = perm_gates(w_ih)
    w_hh = perm_gates(w_hh)
    b = perm_gates(b)

    k_pad = _round_up(K, 128)                  # lane-aligned contraction dim
    o_pad = _round_up(out_size, 128)           # lane-dense output store
    w_ih_p = jnp.pad(w_ih, ((0, k_pad - K), (0, 0)))
    w_lin_p = jnp.pad(w_lin, ((0, 0), (0, o_pad - out_size)))
    b_lin_p = jnp.pad(b_lin, ((0, 0), (0, o_pad - out_size)))

    return {
        "w_ih": w_ih_p, "w_hh": w_hh, "b": b,
        "w_lin": w_lin_p, "b_lin": b_lin_p,
        "input_size": K, "hidden": H, "out_size": out_size,
    }


@jax.jit
def _lstm_call(x, w_ih_p, w_hh, b, w_lin_p, b_lin_p):
    seq_len, batch, input_size = x.shape
    hidden = w_hh.shape[0]
    k_pad = w_ih_p.shape[0]
    o_pad = w_lin_p.shape[1]
    b_pad = _round_up(max(batch, 8), 8)        # f32 sublane multiple

    # Zero-pad x: padded rows/cols are mathematically inert for real ones.
    x_p = jnp.pad(x, ((0, 0), (0, b_pad - batch), (0, k_pad - input_size)))

    # Explicit VMEM budget (double of the static footprint, >= 4 MiB).
    vmem_elems = (x_p.size + w_ih_p.size + b.size + b_lin_p.size
                  + seq_len * b_pad * 4 * hidden          # gates scratch
                  + hidden * 4 * hidden                   # w_hh scratch
                  + hidden * o_pad                        # w_lin scratch
                  + b_pad * o_pad)                        # output
    vmem_limit = int(max(2 * 4 * vmem_elems, 4 << 20))

    return pl.pallas_call(
        lstm_kernel,
        out_shape=jax.ShapeDtypeStruct((b_pad, o_pad), jnp.float32),
        in_specs=[
            pl.BlockSpec(memory_space=pltpu.MemorySpace.VMEM),  # x
            pl.BlockSpec(memory_space=pltpu.MemorySpace.VMEM),  # w_ih
            pl.BlockSpec(memory_space=pltpu.MemorySpace.VMEM),  # b
            pl.BlockSpec(memory_space=pl.ANY),                  # w_hh (manual DMA)
            pl.BlockSpec(memory_space=pl.ANY),                  # w_lin (manual DMA)
            pl.BlockSpec(memory_space=pltpu.MemorySpace.VMEM),  # b_lin
        ],
        out_specs=pl.BlockSpec(memory_space=pltpu.MemorySpace.VMEM),
        scratch_shapes=[
            pltpu.VMEM((seq_len, b_pad, 4 * hidden), jnp.float32),  # gates_x
            pltpu.VMEM((hidden, 4 * hidden), jnp.float32),          # w_hh
            pltpu.VMEM((hidden, o_pad), jnp.float32),               # w_lin
            pltpu.SemaphoreType.DMA((2,)),
        ],
        compiler_params=pltpu.CompilerParams(vmem_limit_bytes=vmem_limit),
    )(x_p, w_ih_p, b, w_hh, w_lin_p, b_lin_p)


def lstm_forward(x, params):
    out = _lstm_call(x, params["w_ih"], params["w_hh"], params["b"],
                     params["w_lin"], params["b_lin"])
    return out[:x.shape[1], :params["out_size"]]


def lstm_ref(x, w_ih, w_hh, b, w_lin, b_lin):
    """Pure-JAX reference matching PyTorch nn.LSTM + Linear semantics
    (original [i, f, g, o] gate order, unpadded weights)."""
    _, batch, _ = x.shape
    H = w_hh.shape[0]
    h = jnp.zeros((batch, H), jnp.float32)
    c = jnp.zeros((batch, H), jnp.float32)

    def step(carry, x_t):
        h, c = carry
        gates = x_t @ w_ih + h @ w_hh + b
        i = jax.nn.sigmoid(gates[:, 0:H])
        f = jax.nn.sigmoid(gates[:, H:2 * H])
        g = jnp.tanh(gates[:, 2 * H:3 * H])
        o = jax.nn.sigmoid(gates[:, 3 * H:4 * H])
        c = f * c + i * g
        h = o * jnp.tanh(c)
        return (h, c), None

    (h, _), _ = jax.lax.scan(step, (h, c), x)
    return h @ w_lin + b_lin


if __name__ == "__main__":
    # Module sizes: n_letters = 52 + 5 = 57, n_hidden = 128.
    # n_categories = len([]) == 0 in the reference script (degenerate),
    # so a small nonzero output size is used instead.
    input_size = 57
    hidden = 128
    output_size = 10
    seq_len = 8
    batch = 2

    key = jax.random.PRNGKey(0)
    k = jax.random.split(key, 7)
    bound = 1.0 / math.sqrt(hidden)

    # PyTorch nn.LSTM params are (4H, in)/(4H, H); store transposed for x @ W.
    w_ih = jax.random.uniform(k[0], (input_size, 4 * hidden), jnp.float32, -bound, bound)
    w_hh = jax.random.uniform(k[1], (hidden, 4 * hidden), jnp.float32, -bound, bound)
    b_ih = jax.random.uniform(k[2], (1, 4 * hidden), jnp.float32, -bound, bound)
    b_hh = jax.random.uniform(k[3], (1, 4 * hidden), jnp.float32, -bound, bound)
    b = b_ih + b_hh
    w_lin = jax.random.uniform(k[4], (hidden, output_size), jnp.float32, -bound, bound)
    b_lin = jax.random.uniform(k[5], (1, output_size), jnp.float32, -bound, bound)

    x = jax.random.normal(k[6], (seq_len, batch, input_size), jnp.float32)

    # One-time weight prep (permute + pad), then the jitted per-call path.
    params = prepare_params(w_ih, w_hh, b, w_lin, b_lin)
    out = lstm_forward(x, params)
    out = jax.block_until_ready(out)

    ref = lstm_ref(x, w_ih, w_hh, b, w_lin, b_lin)
    assert out.shape == (batch, output_size)
    assert jnp.allclose(out, ref, atol=1e-5, rtol=1e-5), (out, ref)

    print("KERNEL_OK")
</pallas_src>

<mosaic_0001>
module attributes {stable_mosaic.version = 11 : i64} {
  func.func @lstm_kernel(%arg0: memref<8x8x128xf32, #tpu.memory_space<vmem>>, %arg1: memref<128x512xf32, #tpu.memory_space<vmem>>, %arg2: memref<1x512xf32, #tpu.memory_space<vmem>>, %arg3: memref<128x512xf32, #tpu.memory_space<any>>, %arg4: memref<128x128xf32, #tpu.memory_space<any>>, %arg5: memref<1x128xf32, #tpu.memory_space<vmem>>, %arg6: memref<8x128xf32, #tpu.memory_space<vmem>>, %arg7: memref<8x8x512xf32, #tpu.memory_space<vmem>>, %arg8: memref<128x512xf32, #tpu.memory_space<vmem>>, %arg9: memref<128x128xf32, #tpu.memory_space<vmem>>, %arg10: memref<2x!tpu.dma_semaphore, #tpu.memory_space<semaphore_mem>>) attributes {dimension_semantics = [], scalar_prefetch = 0 : i64, scratch_operands = 4 : i64, tpu.core_type = #tpu.core_type<tc>} {
    %c0_i32 = arith.constant 0 : i32
    %0 = tpu.memref_slice %arg10[%c0_i32] : memref<2x!tpu.dma_semaphore, #tpu.memory_space<semaphore_mem>> -> memref<1x!tpu.dma_semaphore, #tpu.memory_space<semaphore_mem>>
    %1 = tpu.memref_squeeze %0 : memref<1x!tpu.dma_semaphore, #tpu.memory_space<semaphore_mem>> -> memref<!tpu.dma_semaphore, #tpu.memory_space<semaphore_mem>>
    tpu.enqueue_dma source(%arg3 : memref<128x512xf32, #tpu.memory_space<any>>) target(%arg8 : memref<128x512xf32, #tpu.memory_space<vmem>>) target_semaphore(%1 : memref<!tpu.dma_semaphore, #tpu.memory_space<semaphore_mem>>)
    %c1_i32 = arith.constant 1 : i32
    %2 = tpu.memref_slice %arg10[%c1_i32] : memref<2x!tpu.dma_semaphore, #tpu.memory_space<semaphore_mem>> -> memref<1x!tpu.dma_semaphore, #tpu.memory_space<semaphore_mem>>
    %3 = tpu.memref_squeeze %2 : memref<1x!tpu.dma_semaphore, #tpu.memory_space<semaphore_mem>> -> memref<!tpu.dma_semaphore, #tpu.memory_space<semaphore_mem>>
    tpu.enqueue_dma source(%arg4 : memref<128x128xf32, #tpu.memory_space<any>>) target(%arg9 : memref<128x128xf32, #tpu.memory_space<vmem>>) target_semaphore(%3 : memref<!tpu.dma_semaphore, #tpu.memory_space<semaphore_mem>>)
    %c0 = arith.constant 0 : index
    %c0_0 = arith.constant 0 : index
    %c0_1 = arith.constant 0 : index
    %4 = vector.load %arg0[%c0, %c0_0, %c0_1] : memref<8x8x128xf32, #tpu.memory_space<vmem>>, vector<8x8x128xf32>
    %5 = vector.shape_cast %4 : vector<8x8x128xf32> to vector<64x128xf32>
    %c0_2 = arith.constant 0 : index
    %c0_3 = arith.constant 0 : index
    %6 = vector.load %arg1[%c0_2, %c0_3] : memref<128x512xf32, #tpu.memory_space<vmem>>, vector<128x512xf32>
    %cst = arith.constant dense<0.000000e+00> : vector<64x512xf32>
    %7 = tpu.matmul %5, %6, %cst {dimension_numbers = #tpu.dot_dimension_numbers<[1], [0], [0], [1], [0, 0, 1, 1], [], []>} : vector<64x128xf32>, vector<128x512xf32>, vector<64x512xf32> -> vector<64x512xf32>
    %c0_4 = arith.constant 0 : index
    %c0_5 = arith.constant 0 : index
    %8 = vector.load %arg2[%c0_4, %c0_5] : memref<1x512xf32, #tpu.memory_space<vmem>>, vector<1x512xf32>
    %9 = vector.broadcast %8 : vector<1x512xf32> to vector<64x512xf32>
    %10 = arith.addf %7, %9 : vector<64x512xf32>
    %11 = vector.shape_cast %10 : vector<64x512xf32> to vector<8x8x512xf32>
    %c0_6 = arith.constant 0 : index
    %c0_7 = arith.constant 0 : index
    %c0_8 = arith.constant 0 : index
    %12 = vector.load %arg7[%c0_6, %c0_7, %c0_8] : memref<8x8x512xf32, #tpu.memory_space<vmem>>, vector<8x8x512xf32>
    tpu.vector_store %arg7[%c0_6, %c0_7, %c0_8], %11 {strides = array<i32>} : memref<8x8x512xf32, #tpu.memory_space<vmem>>, vector<8x8x512xf32>,
    %c0_i32_9 = arith.constant 0 : i32
    %13 = tpu.memref_slice %arg10[%c0_i32_9] : memref<2x!tpu.dma_semaphore, #tpu.memory_space<semaphore_mem>> -> memref<1x!tpu.dma_semaphore, #tpu.memory_space<semaphore_mem>>
    %14 = tpu.memref_squeeze %13 : memref<1x!tpu.dma_semaphore, #tpu.memory_space<semaphore_mem>> -> memref<!tpu.dma_semaphore, #tpu.memory_space<semaphore_mem>>
    tpu.wait_dma2 semaphore(%14 : memref<!tpu.dma_semaphore, #tpu.memory_space<semaphore_mem>>) src(%arg3 : memref<128x512xf32, #tpu.memory_space<any>>) dst(%arg8 : memref<128x512xf32, #tpu.memory_space<vmem>>)
    %cst_10 = arith.constant 0.000000e+00 : f32
    %15 = vector.broadcast %cst_10 : f32 to vector<8x128xf32>
    %cst_11 = arith.constant 0.000000e+00 : f32
    %16 = vector.broadcast %cst_11 : f32 to vector<8x128xf32>
    %c0_i32_12 = arith.constant 0 : i32
    %17 = arith.index_cast %c0_i32_12 : i32 to index
    %c0_13 = arith.constant 0 : index
    %c0_14 = arith.constant 0 : index
    %18 = vector.load %arg7[%17, %c0_13, %c0_14] : memref<8x8x512xf32, #tpu.memory_space<vmem>>, vector<1x8x512xf32>
    %19 = vector.shape_cast %18 : vector<1x8x512xf32> to vector<8x512xf32>
    %c0_15 = arith.constant 0 : index
    %c0_16 = arith.constant 0 : index
    %20 = vector.load %arg8[%c0_15, %c0_16] : memref<128x512xf32, #tpu.memory_space<vmem>>, vector<128x512xf32>
    %cst_17 = arith.constant dense<0.000000e+00> : vector<8x512xf32>
    %21 = tpu.matmul %15, %20, %cst_17 {dimension_numbers = #tpu.dot_dimension_numbers<[1], [0], [0], [1], [0, 0, 1, 1], [], []>} : vector<8x128xf32>, vector<128x512xf32>, vector<8x512xf32> -> vector<8x512xf32>
    %22 = arith.addf %19, %21 : vector<8x512xf32>
    %23 = vector.extract_strided_slice %22 {offsets = [0, 0], sizes = [8, 384], strides = [1, 1]} : vector<8x512xf32> to vector<8x384xf32>
    %24 = arith.negf %23 : vector<8x384xf32>
    %25 = math.exp %24 : vector<8x384xf32>
    %cst_18 = arith.constant 1.000000e+00 : f32
    %26 = vector.broadcast %cst_18 : f32 to vector<8x384xf32>
    %27 = arith.addf %26, %25 : vector<8x384xf32>
    %28 = arith.divf %26, %27 : vector<8x384xf32>
    %29 = vector.extract_strided_slice %22 {offsets = [0, 384], sizes = [8, 128], strides = [1, 1]} : vector<8x512xf32> to vector<8x128xf32>
    %30 = math.tanh %29 : vector<8x128xf32>
    %31 = vector.extract_strided_slice %28 {offsets = [0, 0], sizes = [8, 128], strides = [1, 1]} : vector<8x384xf32> to vector<8x128xf32>
    %32 = vector.extract_strided_slice %28 {offsets = [0, 128], sizes = [8, 128], strides = [1, 1]} : vector<8x384xf32> to vector<8x128xf32>
    %33 = vector.extract_strided_slice %28 {offsets = [0, 256], sizes = [8, 128], strides = [1, 1]} : vector<8x384xf32> to vector<8x128xf32>
    %34 = arith.mulf %32, %16 : vector<8x128xf32>
    %35 = arith.mulf %31, %30 : vector<8x128xf32>
    %36 = arith.addf %34, %35 : vector<8x128xf32>
    %37 = math.tanh %36 : vector<8x128xf32>
    %38 = arith.mulf %33, %37 : vector<8x128xf32>
    %c1_i32_19 = arith.constant 1 : i32
    %39 = arith.index_cast %c1_i32_19 : i32 to index
    %c0_20 = arith.constant 0 : index
    %c0_21 = arith.constant 0 : index
    %40 = vector.load %arg7[%39, %c0_20, %c0_21] : memref<8x8x512xf32, #tpu.memory_space<vmem>>, vector<1x8x512xf32>
    %41 = vector.shape_cast %40 : vector<1x8x512xf32> to vector<8x512xf32>
    %c0_22 = arith.constant 0 : index
    %c0_23 = arith.constant 0 : index
    %42 = vector.load %arg8[%c0_22, %c0_23] : memref<128x512xf32, #tpu.memory_space<vmem>>, vector<128x512xf32>
    %cst_24 = arith.constant dense<0.000000e+00> : vector<8x512xf32>
    %43 = tpu.matmul %38, %42, %cst_24 {dimension_numbers = #tpu.dot_dimension_numbers<[1], [0], [0], [1], [0, 0, 1, 1], [], []>} : vector<8x128xf32>, vector<128x512xf32>, vector<8x512xf32> -> vector<8x512xf32>
    %44 = arith.addf %41, %43 : vector<8x512xf32>
    %45 = vector.extract_strided_slice %44 {offsets = [0, 0], sizes = [8, 384], strides = [1, 1]} : vector<8x512xf32> to vector<8x384xf32>
    %46 = arith.negf %45 : vector<8x384xf32>
    %47 = math.exp %46 : vector<8x384xf32>
    %cst_25 = arith.constant 1.000000e+00 : f32
    %48 = vector.broadcast %cst_25 : f32 to vector<8x384xf32>
    %49 = arith.addf %48, %47 : vector<8x384xf32>
    %50 = arith.divf %48, %49 : vector<8x384xf32>
    %51 = vector.extract_strided_slice %44 {offsets = [0, 384], sizes = [8, 128], strides = [1, 1]} : vector<8x512xf32> to vector<8x128xf32>
    %52 = math.tanh %51 : vector<8x128xf32>
    %53 = vector.extract_strided_slice %50 {offsets = [0, 0], sizes = [8, 128], strides = [1, 1]} : vector<8x384xf32> to vector<8x128xf32>
    %54 = vector.extract_strided_slice %50 {offsets = [0, 128], sizes = [8, 128], strides = [1, 1]} : vector<8x384xf32> to vector<8x128xf32>
    %55 = vector.extract_strided_slice %50 {offsets = [0, 256], sizes = [8, 128], strides = [1, 1]} : vector<8x384xf32> to vector<8x128xf32>
    %56 = arith.mulf %54, %36 : vector<8x128xf32>
    %57 = arith.mulf %53, %52 : vector<8x128xf32>
    %58 = arith.addf %56, %57 : vector<8x128xf32>
    %59 = math.tanh %58 : vector<8x128xf32>
    %60 = arith.mulf %55, %59 : vector<8x128xf32>
    %c2_i32 = arith.constant 2 : i32
    %61 = arith.index_cast %c2_i32 : i32 to index
    %c0_26 = arith.constant 0 : index
    %c0_27 = arith.constant 0 : index
    %62 = vector.load %arg7[%61, %c0_26, %c0_27] : memref<8x8x512xf32, #tpu.memory_space<vmem>>, vector<1x8x512xf32>
    %63 = vector.shape_cast %62 : vector<1x8x512xf32> to vector<8x512xf32>
    %c0_28 = arith.constant 0 : index
    %c0_29 = arith.constant 0 : index
    %64 = vector.load %arg8[%c0_28, %c0_29] : memref<128x512xf32, #tpu.memory_space<vmem>>, vector<128x512xf32>
    %cst_30 = arith.constant dense<0.000000e+00> : vector<8x512xf32>
    %65 = tpu.matmul %60, %64, %cst_30 {dimension_numbers = #tpu.dot_dimension_numbers<[1], [0], [0], [1], [0, 0, 1, 1], [], []>} : vector<8x128xf32>, vector<128x512xf32>, vector<8x512xf32> -> vector<8x512xf32>
    %66 = arith.addf %63, %65 : vector<8x512xf32>
    %67 = vector.extract_strided_slice %66 {offsets = [0, 0], sizes = [8, 384], strides = [1, 1]} : vector<8x512xf32> to vector<8x384xf32>
    %68 = arith.negf %67 : vector<8x384xf32>
    %69 = math.exp %68 : vector<8x384xf32>
    %cst_31 = arith.constant 1.000000e+00 : f32
    %70 = vector.broadcast %cst_31 : f32 to vector<8x384xf32>
    %71 = arith.addf %70, %69 : vector<8x384xf32>
    %72 = arith.divf %70, %71 : vector<8x384xf32>
    %73 = vector.extract_strided_slice %66 {offsets = [0, 384], sizes = [8, 128], strides = [1, 1]} : vector<8x512xf32> to vector<8x128xf32>
    %74 = math.tanh %73 : vector<8x128xf32>
    %75 = vector.extract_strided_slice %72 {offsets = [0, 0], sizes = [8, 128], strides = [1, 1]} : vector<8x384xf32> to vector<8x128xf32>
    %76 = vector.extract_strided_slice %72 {offsets = [0, 128], sizes = [8, 128], strides = [1, 1]} : vector<8x384xf32> to vector<8x128xf32>
    %77 = vector.extract_strided_slice %72 {offsets = [0, 256], sizes = [8, 128], strides = [1, 1]} : vector<8x384xf32> to vector<8x128xf32>
    %78 = arith.mulf %76, %58 : vector<8x128xf32>
    %79 = arith.mulf %75, %74 : vector<8x128xf32>
    %80 = arith.addf %78, %79 : vector<8x128xf32>
    %81 = math.tanh %80 : vector<8x128xf32>
    %82 = arith.mulf %77, %81 : vector<8x128xf32>
    %c3_i32 = arith.constant 3 : i32
    %83 = arith.index_cast %c3_i32 : i32 to index
    %c0_32 = arith.constant 0 : index
    %c0_33 = arith.constant 0 : index
    %84 = vector.load %arg7[%83, %c0_32, %c0_33] : memref<8x8x512xf32, #tpu.memory_space<vmem>>, vector<1x8x512xf32>
    %85 = vector.shape_cast %84 : vector<1x8x512xf32> to vector<8x512xf32>
    %c0_34 = arith.constant 0 : index
    %c0_35 = arith.constant 0 : index
    %86 = vector.load %arg8[%c0_34, %c0_35] : memref<128x512xf32, #tpu.memory_space<vmem>>, vector<128x512xf32>
    %cst_36 = arith.constant dense<0.000000e+00> : vector<8x512xf32>
    %87 = tpu.matmul %82, %86, %cst_36 {dimension_numbers = #tpu.dot_dimension_numbers<[1], [0], [0], [1], [0, 0, 1, 1], [], []>} : vector<8x128xf32>, vector<128x512xf32>, vector<8x512xf32> -> vector<8x512xf32>
    %88 = arith.addf %85, %87 : vector<8x512xf32>
    %89 = vector.extract_strided_slice %88 {offsets = [0, 0], sizes = [8, 384], strides = [1, 1]} : vector<8x512xf32> to vector<8x384xf32>
    %90 = arith.negf %89 : vector<8x384xf32>
    %91 = math.exp %90 : vector<8x384xf32>
    %cst_37 = arith.constant 1.000000e+00 : f32
    %92 = vector.broadcast %cst_37 : f32 to vector<8x384xf32>
    %93 = arith.addf %92, %91 : vector<8x384xf32>
    %94 = arith.divf %92, %93 : vector<8x384xf32>
    %95 = vector.extract_strided_slice %88 {offsets = [0, 384], sizes = [8, 128], strides = [1, 1]} : vector<8x512xf32> to vector<8x128xf32>
    %96 = math.tanh %95 : vector<8x128xf32>
    %97 = vector.extract_strided_slice %94 {offsets = [0, 0], sizes = [8, 128], strides = [1, 1]} : vector<8x384xf32> to vector<8x128xf32>
    %98 = vector.extract_strided_slice %94 {offsets = [0, 128], sizes = [8, 128], strides = [1, 1]} : vector<8x384xf32> to vector<8x128xf32>
    %99 = vector.extract_strided_slice %94 {offsets = [0, 256], sizes = [8, 128], strides = [1, 1]} : vector<8x384xf32> to vector<8x128xf32>
    %100 = arith.mulf %98, %80 : vector<8x128xf32>
    %101 = arith.mulf %97, %96 : vector<8x128xf32>
    %102 = arith.addf %100, %101 : vector<8x128xf32>
    %103 = math.tanh %102 : vector<8x128xf32>
    %104 = arith.mulf %99, %103 : vector<8x128xf32>
    %c4_i32 = arith.constant 4 : i32
    %105 = arith.index_cast %c4_i32 : i32 to index
    %c0_38 = arith.constant 0 : index
    %c0_39 = arith.constant 0 : index
    %106 = vector.load %arg7[%105, %c0_38, %c0_39] : memref<8x8x512xf32, #tpu.memory_space<vmem>>, vector<1x8x512xf32>
    %107 = vector.shape_cast %106 : vector<1x8x512xf32> to vector<8x512xf32>
    %c0_40 = arith.constant 0 : index
    %c0_41 = arith.constant 0 : index
    %108 = vector.load %arg8[%c0_40, %c0_41] : memref<128x512xf32, #tpu.memory_space<vmem>>, vector<128x512xf32>
    %cst_42 = arith.constant dense<0.000000e+00> : vector<8x512xf32>
    %109 = tpu.matmul %104, %108, %cst_42 {dimension_numbers = #tpu.dot_dimension_numbers<[1], [0], [0], [1], [0, 0, 1, 1], [], []>} : vector<8x128xf32>, vector<128x512xf32>, vector<8x512xf32> -> vector<8x512xf32>
    %110 = arith.addf %107, %109 : vector<8x512xf32>
    %111 = vector.extract_strided_slice %110 {offsets = [0, 0], sizes = [8, 384], strides = [1, 1]} : vector<8x512xf32> to vector<8x384xf32>
    %112 = arith.negf %111 : vector<8x384xf32>
    %113 = math.exp %112 : vector<8x384xf32>
    %cst_43 = arith.constant 1.000000e+00 : f32
    %114 = vector.broadcast %cst_43 : f32 to vector<8x384xf32>
    %115 = arith.addf %114, %113 : vector<8x384xf32>
    %116 = arith.divf %114, %115 : vector<8x384xf32>
    %117 = vector.extract_strided_slice %110 {offsets = [0, 384], sizes = [8, 128], strides = [1, 1]} : vector<8x512xf32> to vector<8x128xf32>
    %118 = math.tanh %117 : vector<8x128xf32>
    %119 = vector.extract_strided_slice %116 {offsets = [0, 0], sizes = [8, 128], strides = [1, 1]} : vector<8x384xf32> to vector<8x128xf32>
    %120 = vector.extract_strided_slice %116 {offsets = [0, 128], sizes = [8, 128], strides = [1, 1]} : vector<8x384xf32> to vector<8x128xf32>
    %121 = vector.extract_strided_slice %116 {offsets = [0, 256], sizes = [8, 128], strides = [1, 1]} : vector<8x384xf32> to vector<8x128xf32>
    %122 = arith.mulf %120, %102 : vector<8x128xf32>
    %123 = arith.mulf %119, %118 : vector<8x128xf32>
    %124 = arith.addf %122, %123 : vector<8x128xf32>
    %125 = math.tanh %124 : vector<8x128xf32>
    %126 = arith.mulf %121, %125 : vector<8x128xf32>
    %c5_i32 = arith.constant 5 : i32
    %127 = arith.index_cast %c5_i32 : i32 to index
    %c0_44 = arith.constant 0 : index
    %c0_45 = arith.constant 0 : index
    %128 = vector.load %arg7[%127, %c0_44, %c0_45] : memref<8x8x512xf32, #tpu.memory_space<vmem>>, vector<1x8x512xf32>
    %129 = vector.shape_cast %128 : vector<1x8x512xf32> to vector<8x512xf32>
    %c0_46 = arith.constant 0 : index
    %c0_47 = arith.constant 0 : index
    %130 = vector.load %arg8[%c0_46, %c0_47] : memref<128x512xf32, #tpu.memory_space<vmem>>, vector<128x512xf32>
    %cst_48 = arith.constant dense<0.000000e+00> : vector<8x512xf32>
    %131 = tpu.matmul %126, %130, %cst_48 {dimension_numbers = #tpu.dot_dimension_numbers<[1], [0], [0], [1], [0, 0, 1, 1], [], []>} : vector<8x128xf32>, vector<128x512xf32>, vector<8x512xf32> -> vector<8x512xf32>
    %132 = arith.addf %129, %131 : vector<8x512xf32>
    %133 = vector.extract_strided_slice %132 {offsets = [0, 0], sizes = [8, 384], strides = [1, 1]} : vector<8x512xf32> to vector<8x384xf32>
    %134 = arith.negf %133 : vector<8x384xf32>
    %135 = math.exp %134 : vector<8x384xf32>
    %cst_49 = arith.constant 1.000000e+00 : f32
    %136 = vector.broadcast %cst_49 : f32 to vector<8x384xf32>
    %137 = arith.addf %136, %135 : vector<8x384xf32>
    %138 = arith.divf %136, %137 : vector<8x384xf32>
    %139 = vector.extract_strided_slice %132 {offsets = [0, 384], sizes = [8, 128], strides = [1, 1]} : vector<8x512xf32> to vector<8x128xf32>
    %140 = math.tanh %139 : vector<8x128xf32>
    %141 = vector.extract_strided_slice %138 {offsets = [0, 0], sizes = [8, 128], strides = [1, 1]} : vector<8x384xf32> to vector<8x128xf32>
    %142 = vector.extract_strided_slice %138 {offsets = [0, 128], sizes = [8, 128], strides = [1, 1]} : vector<8x384xf32> to vector<8x128xf32>
    %143 = vector.extract_strided_slice %138 {offsets = [0, 256], sizes = [8, 128], strides = [1, 1]} : vector<8x384xf32> to vector<8x128xf32>
    %144 = arith.mulf %142, %124 : vector<8x128xf32>
    %145 = arith.mulf %141, %140 : vector<8x128xf32>
    %146 = arith.addf %144, %145 : vector<8x128xf32>
    %147 = math.tanh %146 : vector<8x128xf32>
    %148 = arith.mulf %143, %147 : vector<8x128xf32>
    %c6_i32 = arith.constant 6 : i32
    %149 = arith.index_cast %c6_i32 : i32 to index
    %c0_50 = arith.constant 0 : index
    %c0_51 = arith.constant 0 : index
    %150 = vector.load %arg7[%149, %c0_50, %c0_51] : memref<8x8x512xf32, #tpu.memory_space<vmem>>, vector<1x8x512xf32>
    %151 = vector.shape_cast %150 : vector<1x8x512xf32> to vector<8x512xf32>
    %c0_52 = arith.constant 0 : index
    %c0_53 = arith.constant 0 : index
    %152 = vector.load %arg8[%c0_52, %c0_53] : memref<128x512xf32, #tpu.memory_space<vmem>>, vector<128x512xf32>
    %cst_54 = arith.constant dense<0.000000e+00> : vector<8x512xf32>
    %153 = tpu.matmul %148, %152, %cst_54 {dimension_numbers = #tpu.dot_dimension_numbers<[1], [0], [0], [1], [0, 0, 1, 1], [], []>} : vector<8x128xf32>, vector<128x512xf32>, vector<8x512xf32> -> vector<8x512xf32>
    %154 = arith.addf %151, %153 : vector<8x512xf32>
    %155 = vector.extract_strided_slice %154 {offsets = [0, 0], sizes = [8, 384], strides = [1, 1]} : vector<8x512xf32> to vector<8x384xf32>
    %156 = arith.negf %155 : vector<8x384xf32>
    %157 = math.exp %156 : vector<8x384xf32>
    %cst_55 = arith.constant 1.000000e+00 : f32
    %158 = vector.broadcast %cst_55 : f32 to vector<8x384xf32>
    %159 = arith.addf %158, %157 : vector<8x384xf32>
    %160 = arith.divf %158, %159 : vector<8x384xf32>
    %161 = vector.extract_strided_slice %154 {offsets = [0, 384], sizes = [8, 128], strides = [1, 1]} : vector<8x512xf32> to vector<8x128xf32>
    %162 = math.tanh %161 : vector<8x128xf32>
    %163 = vector.extract_strided_slice %160 {offsets = [0, 0], sizes = [8, 128], strides = [1, 1]} : vector<8x384xf32> to vector<8x128xf32>
    %164 = vector.extract_strided_slice %160 {offsets = [0, 128], sizes = [8, 128], strides = [1, 1]} : vector<8x384xf32> to vector<8x128xf32>
    %165 = vector.extract_strided_slice %160 {offsets = [0, 256], sizes = [8, 128], strides = [1, 1]} : vector<8x384xf32> to vector<8x128xf32>
    %166 = arith.mulf %164, %146 : vector<8x128xf32>
    %167 = arith.mulf %163, %162 : vector<8x128xf32>
    %168 = arith.addf %166, %167 : vector<8x128xf32>
    %169 = math.tanh %168 : vector<8x128xf32>
    %170 = arith.mulf %165, %169 : vector<8x128xf32>
    %c7_i32 = arith.constant 7 : i32
    %171 = arith.index_cast %c7_i32 : i32 to index
    %c0_56 = arith.constant 0 : index
    %c0_57 = arith.constant 0 : index
    %172 = vector.load %arg7[%171, %c0_56, %c0_57] : memref<8x8x512xf32, #tpu.memory_space<vmem>>, vector<1x8x512xf32>
    %173 = vector.shape_cast %172 : vector<1x8x512xf32> to vector<8x512xf32>
    %c0_58 = arith.constant 0 : index
    %c0_59 = arith.constant 0 : index
    %174 = vector.load %arg8[%c0_58, %c0_59] : memref<128x512xf32, #tpu.memory_space<vmem>>, vector<128x512xf32>
    %cst_60 = arith.constant dense<0.000000e+00> : vector<8x512xf32>
    %175 = tpu.matmul %170, %174, %cst_60 {dimension_numbers = #tpu.dot_dimension_numbers<[1], [0], [0], [1], [0, 0, 1, 1], [], []>} : vector<8x128xf32>, vector<128x512xf32>, vector<8x512xf32> -> vector<8x512xf32>
    %176 = arith.addf %173, %175 : vector<8x512xf32>
    %177 = vector.extract_strided_slice %176 {offsets = [0, 0], sizes = [8, 384], strides = [1, 1]} : vector<8x512xf32> to vector<8x384xf32>
    %178 = arith.negf %177 : vector<8x384xf32>
    %179 = math.exp %178 : vector<8x384xf32>
    %cst_61 = arith.constant 1.000000e+00 : f32
    %180 = vector.broadcast %cst_61 : f32 to vector<8x384xf32>
    %181 = arith.addf %180, %179 : vector<8x384xf32>
    %182 = arith.divf %180, %181 : vector<8x384xf32>
    %183 = vector.extract_strided_slice %176 {offsets = [0, 384], sizes = [8, 128], strides = [1, 1]} : vector<8x512xf32> to vector<8x128xf32>
    %184 = math.tanh %183 : vector<8x128xf32>
    %185 = vector.extract_strided_slice %182 {offsets = [0, 0], sizes = [8, 128], strides = [1, 1]} : vector<8x384xf32> to vector<8x128xf32>
    %186 = vector.extract_strided_slice %182 {offsets = [0, 128], sizes = [8, 128], strides = [1, 1]} : vector<8x384xf32> to vector<8x128xf32>
    %187 = vector.extract_strided_slice %182 {offsets = [0, 256], sizes = [8, 128], strides = [1, 1]} : vector<8x384xf32> to vector<8x128xf32>
    %188 = arith.mulf %186, %168 : vector<8x128xf32>
    %189 = arith.mulf %185, %184 : vector<8x128xf32>
    %190 = arith.addf %188, %189 : vector<8x128xf32>
    %191 = math.tanh %190 : vector<8x128xf32>
    %192 = arith.mulf %187, %191 : vector<8x128xf32>
    %c8_i32 = arith.constant 8 : i32
    %c1_i32_62 = arith.constant 1 : i32
    %193 = tpu.memref_slice %arg10[%c1_i32_62] : memref<2x!tpu.dma_semaphore, #tpu.memory_space<semaphore_mem>> -> memref<1x!tpu.dma_semaphore, #tpu.memory_space<semaphore_mem>>
    %194 = tpu.memref_squeeze %193 : memref<1x!tpu.dma_semaphore, #tpu.memory_space<semaphore_mem>> -> memref<!tpu.dma_semaphore, #tpu.memory_space<semaphore_mem>>
    tpu.wait_dma2 semaphore(%194 : memref<!tpu.dma_semaphore, #tpu.memory_space<semaphore_mem>>) src(%arg4 : memref<128x128xf32, #tpu.memory_space<any>>) dst(%arg9 : memref<128x128xf32, #tpu.memory_space<vmem>>)
    %c0_63 = arith.constant 0 : index
    %c0_64 = arith.constant 0 : index
    %195 = vector.load %arg9[%c0_63, %c0_64] : memref<128x128xf32, #tpu.memory_space<vmem>>, vector<128x128xf32>
    %cst_65 = arith.constant dense<0.000000e+00> : vector<8x128xf32>
    %196 = tpu.matmul %192, %195, %cst_65 {dimension_numbers = #tpu.dot_dimension_numbers<[1], [0], [0], [1], [0, 0, 1, 1], [], []>} : vector<8x128xf32>, vector<128x128xf32>, vector<8x128xf32> -> vector<8x128xf32>
    %c0_66 = arith.constant 0 : index
    %c0_67 = arith.constant 0 : index
    %197 = vector.load %arg5[%c0_66, %c0_67] : memref<1x128xf32, #tpu.memory_space<vmem>>, vector<1x128xf32>
    %198 = vector.broadcast %197 : vector<1x128xf32> to vector<8x128xf32>
    %199 = arith.addf %196, %198 : vector<8x128xf32>
    %c0_68 = arith.constant 0 : index
    %c0_69 = arith.constant 0 : index
    %200 = vector.load %arg6[%c0_68, %c0_69] : memref<8x128xf32, #tpu.memory_space<vmem>>, vector<8x128xf32>
    tpu.vector_store %arg6[%c0_68, %c0_69], %199 {strides = array<i32>} : memref<8x128xf32, #tpu.memory_space<vmem>>, vector<8x128xf32>,
    return
  }
}

</mosaic_0001>

<llo_original>
// kernel: _lstm_call.1
$region0: #{_lstm_call.1}
  #allocation0 [shape = 'u32[]', space=smem, size = 0x4, offset = 0x4, fixed_abs, tag = 'smem constant byte address 0x4 - core index']
  #allocation1 [shape = 'u32[144,128]{1,0:T(1,128)}', space=vmem, size = 0x12000, scoped, tag = 'internal scratch']
  #allocation2 [shape = 'f32[8,8,512]{2,1,0:T(8,128)}', space=vmem, size = 0x20000, scoped, tag = 'scratch operand']
  #allocation3 [shape = 'f32[128,512]{1,0:T(8,128)}', space=vmem, size = 0x40000, scoped, tag = 'scratch operand']
  #allocation4 [shape = 'f32[128,128]{1,0:T(8,128)}', space=vmem, size = 0x10000, scoped, tag = 'scratch operand']
  #allocation5 [shape = 's32[2]{0}', space=sflag, size = 0x8, scoped, tag = 'scratch operand']
  #allocation10 [shape = 's32[]', space=sflag, size = 0x4, offset = 0, fixed_abs, tag = 'sflag constant byte address 0x0 - dummy sync flag']
  #allocation11 [shape = 's32[]', space=sflag, size = 0x4, offset = 0, fixed_abs, tag = 'sflag constant byte address 0x0 - dummy sync flag']
  #allocation12 [shape = 'u32[]', space=smem, size = 0x4, offset = 0x44, fixed_abs, tag = 'smem constant byte address 0x44 - assertion arg 0']
  #allocation13 [shape = 'u32[]', space=smem, size = 0x4, offset = 0x48, fixed_abs, tag = 'smem constant byte address 0x48 - assertion arg 1']
  #allocation14 [shape = 's32[]', space=sflag, size = 0x4, offset = 0, fixed_abs, tag = 'sflag constant byte address 0x0 - dummy sync flag']
  #allocation15 [shape = 's32[]', space=sflag, size = 0x4, offset = 0, fixed_abs, tag = 'sflag constant byte address 0x0 - dummy sync flag']
  %s0 = inlined_call_operand.vmem [shape: f32[8,8,128], index: 0, kind: input, shape index: {}]
  %s1 = inlined_call_operand.hbm [shape: f32[128,512], index: 1, kind: input, shape index: {}]
  %s2 = inlined_call_operand.vmem [shape: f32[1,512], index: 2, kind: input, shape index: {}]
  %s3 = inlined_call_operand.hbm [shape: f32[128,512], index: 3, kind: input, shape index: {}]
  %s4 = inlined_call_operand.hbm [shape: f32[128,128], index: 4, kind: input, shape index: {}]
  %s5 = inlined_call_operand.vmem [shape: f32[1,128], index: 5, kind: input, shape index: {}]
  %s6 = inlined_call_operand.hbm [shape: f32[8,128], index: 6, kind: output, shape index: {}]
  %s7 = sld [smem:[#allocation0]]
  $region38: #{_lstm_call.1} parent=0
    _
  %s9 = ssub.s32 1, %s7
  %s10 = scalar_select 0, %s9, %s7
  $region1: #{_lstm_call.1} parent=0
    #allocation6 [shape = 'u8[262144]{0}', space=vmem, size = 0x40000, scoped, tag = 'input window, operand 1, single buffered']
    #allocation7 [shape = 's32[1]{0}', space=sflag, size = 0x4, scoped, tag = 'scoped memory for _lstm_call.1']
    #allocation8 [shape = 's32[1]{0}', space=sflag, size = 0x4, scoped, tag = 'scoped memory for _lstm_call.1']
    #allocation9 [shape = 'u8[4096]{0}', space=vmem, size = 0x1000, scoped, tag = 'output window, operand 0, single buffered']
    %11 = vsyncpa [#allocation7], 0
    %12 = vsyncpa [#allocation8], 0
    // Predicated region
    $region2: #{_lstm_call.1} parent=1 // pred_check
      _
    $region3: #{_lstm_call.1} parent=1 // pred_check_branch
      %14 = sbr.rel (0) target = $region5
    $region4: #{_lstm_call.1} parent=1 // pred_region
      _
    $region5: #{_lstm_call.1} parent=1 // pred_fallthru
      _
    // Predicated region
    $region6: #{_lstm_call.1} parent=1 // pred_check
      _
    $region7: #{_lstm_call.1} parent=1 // pred_check_branch
      %16 = sbr.rel (0) target = $region9
    $region8: #{_lstm_call.1} parent=1 // pred_region
      %s18 = ssub.s32 8192, 8192
      %19 = vsyncadd [#allocation7], %s18
      %s20 = sshll.u32 [#allocation6], 4
      %s21 = int_to_ptr.vmem [resolvable:$true] %s20
      %26 = dma.hbm_to_vmem [thread:$0]  %s1, 8192, %s21, [#allocation7], 512, 512, 32
    $region9: #{_lstm_call.1} parent=1 // pred_fallthru
      _
    // Predicated region
    $region10: #{_lstm_call.1} parent=1 // pred_check
      _
    $region11: #{_lstm_call.1} parent=1 // pred_check_branch
      %28 = sbr.rel (0) target = $region13
    $region12: #{_lstm_call.1} parent=1 // pred_region
      _
    $region13: #{_lstm_call.1} parent=1 // pred_fallthru
      _
    // Predicated region
    $region14: #{_lstm_call.1} parent=1 // pred_check
      _
    $region15: #{_lstm_call.1} parent=1 // pred_check_branch
      %30 = sbr.rel (0) target = $region17
    $region16: #{_lstm_call.1} parent=1 // pred_region
      _
    $region17: #{_lstm_call.1} parent=1 // pred_fallthru
      _
    // Predicated region
    $region18: #{_lstm_call.1} parent=1 // pred_check
      _
    $region19: #{_lstm_call.1} parent=1 // pred_check_branch
      %32 = sbr.rel (0) target = $region21
    $region20: #{_lstm_call.1} parent=1 // pred_region
      %33 = dma.done [#allocation7], 8192
    $region21: #{_lstm_call.1} parent=1 // pred_fallthru
      _
    // Predicated region
    $region22: #{_lstm_call.1} parent=1 // pred_check
      _
    $region23: #{_lstm_call.1} parent=1 // pred_check_branch
      %35 = sbr.rel target = $region25
    $region24: #{_lstm_call.1} parent=1 // pred_region
      %36 = sst [smem:[#allocation12]] [#allocation11]
      %37 = sst [smem:[#allocation13]] [#allocation10]
    $region25: #{_lstm_call.1} parent=1 // pred_fallthru
      _
    %39 = shalt.err (0)
    %s41 = sshll.u32 [#allocation3], 4
    %s42 = int_to_ptr.vmem [resolvable:$true] %s41
    %44 = dma.hbm_to_vmem [thread:$0]  %s3, 8192, %s42, [#allocation5]
    %s45 = scalar_lea.sflag [#allocation5], 1
    // Predicated region
    $region26: #{_lstm_call.1} parent=1 // pred_check
      _
    $region27: #{_lstm_call.1} parent=1 // pred_check_branch
      %47 = sbr.rel target = $region29
    $region28: #{_lstm_call.1} parent=1 // pred_region
      %48 = sst [smem:[#allocation12]] [#allocation15]
      %49 = sst [smem:[#allocation13]] [#allocation14]
    $region29: #{_lstm_call.1} parent=1 // pred_fallthru
      _
    %51 = shalt.err (0)
    %s53 = sshll.u32 [#allocation4], 4
    %s54 = int_to_ptr.vmem [resolvable:$true] %s53
    %56 = dma.hbm_to_vmem [thread:$0]  %s4, 2048, %s54, %s45
    %v57 = vld [vmem:[%s0] sm:$0xff]
    %v58 = vld [vmem:[%s0 + $0x8] sm:$0xff]
    %v59 = vld [vmem:[%s0 + $0x10] sm:$0xff]
    %v60 = vld [vmem:[%s0 + $0x18] sm:$0xff]
    %v61 = vld [vmem:[%s0 + $0x20] sm:$0xff]
    %v62 = vld [vmem:[%s0 + $0x28] sm:$0xff]
    %v63 = vld [vmem:[%s0 + $0x30] sm:$0xff]
    %v64 = vld [vmem:[%s0 + $0x38] sm:$0xff]
    %v65 = vld [vmem:[#allocation6] sm:$0xff]
    %v66 = vld [vmem:[#allocation6 + $0x8] sm:$0xff]
    %v67 = vld [vmem:[#allocation6 + $0x10] sm:$0xff]
    %v68 = vld [vmem:[#allocation6 + $0x18] sm:$0xff]
    %v69 = vld [vmem:[#allocation6 + $0x20] sm:$0xff]
    %v70 = vld [vmem:[#allocation6 + $0x28] sm:$0xff]
    %v71 = vld [vmem:[#allocation6 + $0x30] sm:$0xff]
    %v72 = vld [vmem:[#allocation6 + $0x38] sm:$0xff]
    %v73 = vld [vmem:[#allocation6 + $0x40] sm:$0xff]
    %v74 = vld [vmem:[#allocation6 + $0x48] sm:$0xff]
    %v75 = vld [vmem:[#allocation6 + $0x50] sm:$0xff]
    %v76 = vld [vmem:[#allocation6 + $0x58] sm:$0xff]
    %v77 = vld [vmem:[#allocation6 + $0x60] sm:$0xff]
    %v78 = vld [vmem:[#allocation6 + $0x68] sm:$0xff]
    %v79 = vld [vmem:[#allocation6 + $0x70] sm:$0xff]
    %v80 = vld [vmem:[#allocation6 + $0x78] sm:$0xff]
    %v81 = vld [vmem:[#allocation6 + $0x80] sm:$0xff]
    %v82 = vld [vmem:[#allocation6 + $0x88] sm:$0xff]
    %v83 = vld [vmem:[#allocation6 + $0x90] sm:$0xff]
    %v84 = vld [vmem:[#allocation6 + $0x98] sm:$0xff]
    %v85 = vld [vmem:[#allocation6 + $0xa0] sm:$0xff]
    %v86 = vld [vmem:[#allocation6 + $0xa8] sm:$0xff]
    %v87 = vld [vmem:[#allocation6 + $0xb0] sm:$0xff]
    %v88 = vld [vmem:[#allocation6 + $0xb8] sm:$0xff]
    %v89 = vld [vmem:[#allocation6 + $0xc0] sm:$0xff]
    %v90 = vld [vmem:[#allocation6 + $0xc8] sm:$0xff]
    %v91 = vld [vmem:[#allocation6 + $0xd0] sm:$0xff]
    %v92 = vld [vmem:[#allocation6 + $0xd8] sm:$0xff]
    %v93 = vld [vmem:[#allocation6 + $0xe0] sm:$0xff]
    %v94 = vld [vmem:[#allocation6 + $0xe8] sm:$0xff]
    %v95 = vld [vmem:[#allocation6 + $0xf0] sm:$0xff]
    %v96 = vld [vmem:[#allocation6 + $0xf8] sm:$0xff]
    %v97 = vld [vmem:[#allocation6 + $0x100] sm:$0xff]
    %v98 = vld [vmem:[#allocation6 + $0x108] sm:$0xff]
    %v99 = vld [vmem:[#allocation6 + $0x110] sm:$0xff]
    %v100 = vld [vmem:[#allocation6 + $0x118] sm:$0xff]
    %v101 = vld [vmem:[#allocation6 + $0x120] sm:$0xff]
    %v102 = vld [vmem:[#allocation6 + $0x128] sm:$0xff]
    %v103 = vld [vmem:[#allocation6 + $0x130] sm:$0xff]
    %v104 = vld [vmem:[#allocation6 + $0x138] sm:$0xff]
    %v105 = vld [vmem:[#allocation6 + $0x140] sm:$0xff]
    %v106 = vld [vmem:[#allocation6 + $0x148] sm:$0xff]
    %v107 = vld [vmem:[#allocation6 + $0x150] sm:$0xff]
    %v108 = vld [vmem:[#allocation6 + $0x158] sm:$0xff]
    %v109 = vld [vmem:[#allocation6 + $0x160] sm:$0xff]
    %v110 = vld [vmem:[#allocation6 + $0x168] sm:$0xff]
    %v111 = vld [vmem:[#allocation6 + $0x170] sm:$0xff]
    %v112 = vld [vmem:[#allocation6 + $0x178] sm:$0xff]
    %v113 = vld [vmem:[#allocation6 + $0x180] sm:$0xff]
    %v114 = vld [vmem:[#allocation6 + $0x188] sm:$0xff]
    %v115 = vld [vmem:[#allocation6 + $0x190] sm:$0xff]
    %v116 = vld [vmem:[#allocation6 + $0x198] sm:$0xff]
    %v117 = vld [vmem:[#allocation6 + $0x1a0] sm:$0xff]
    %v118 = vld [vmem:[#allocation6 + $0x1a8] sm:$0xff]
    %v119 = vld [vmem:[#allocation6 + $0x1b0] sm:$0xff]
    %v120 = vld [vmem:[#allocation6 + $0x1b8] sm:$0xff]
    %v121 = vld [vmem:[#allocation6 + $0x1c0] sm:$0xff]
    %v122 = vld [vmem:[#allocation6 + $0x1c8] sm:$0xff]
    %v123 = vld [vmem:[#allocation6 + $0x1d0] sm:$0xff]
    %v124 = vld [vmem:[#allocation6 + $0x1d8] sm:$0xff]
    %v125 = vld [vmem:[#allocation6 + $0x1e0] sm:$0xff]
    %v126 = vld [vmem:[#allocation6 + $0x1e8] sm:$0xff]
    %v127 = vld [vmem:[#allocation6 + $0x1f0] sm:$0xff]
    %v128 = vld [vmem:[#allocation6 + $0x1f8] sm:$0xff]
    %v129 = vld [vmem:[%s2] sm:$0xf]
    %v131 = vlaneseq
    %v132 = vshrl.u32 %v131, 7
    %v133 = vsub.s32 0, %v132
    %v134 = vrot.slane %v129, %v133
    %v135 = vlaneseq
    %v136 = vshrl.u32 %v135, 7
    %v137 = vsub.s32 1, %v136
    %v138 = vrot.slane %v129, %v137
    %v139 = vlaneseq
    %v140 = vshrl.u32 %v139, 7
    %v141 = vsub.s32 2, %v140
    %v142 = vrot.slane %v129, %v141
    %v143 = vlaneseq
    %v144 = vshrl.u32 %v143, 7
    %v145 = vsub.s32 3, %v144
    %v146 = vrot.slane %v129, %v145
    %151 = vmatprep.subr.mxu0 %v66
    %152 = vmatpush1.msra.mxu0 %v65
    %153 = vmatprep.subr.mxu0 %v70
    %154 = vmatpush1.msra.mxu0 %v69
    %155 = vmatprep.subr.mxu0 %v74
    %156 = vmatpush1.msra.mxu0 %v73
    %157 = vmatprep.subr.mxu0 %v78
    %158 = vmatpush1.msra.mxu0 %v77
    %159 = vmatprep.subr.mxu0 %v82
    %160 = vmatpush1.msra.mxu0 %v81
    %161 = vmatprep.subr.mxu0 %v86
    %162 = vmatpush1.msra.mxu0 %v85
    %163 = vmatprep.subr.mxu0 %v90
    %164 = vmatpush1.msra.mxu0 %v89
    %165 = vmatprep.subr.mxu0 %v94
    %166 = vmatpush1.msra.mxu0 %v93
    %167 = vmatprep.subr.mxu0 %v98
    %168 = vmatpush1.msra.mxu0 %v97
    %169 = vmatprep.subr.mxu0 %v102
    %170 = vmatpush1.msra.mxu0 %v101
    %171 = vmatprep.subr.mxu0 %v106
    %172 = vmatpush1.msra.mxu0 %v105
    %173 = vmatprep.subr.mxu0 %v110
    %174 = vmatpush1.msra.mxu0 %v109
    %175 = vmatprep.subr.mxu0 %v114
    %176 = vmatpush1.msra.mxu0 %v113
    %177 = vmatprep.subr.mxu0 %v118
    %178 = vmatpush1.msra.mxu0 %v117
    %179 = vmatprep.subr.mxu0 %v122
    %180 = vmatpush1.msra.mxu0 %v121
    %181 = vmatprep.subr.mxu0 %v126
    %182 = vmatpush1.msra.mxu0 %v125
    %183 = vmatprep.subr.mxu0 0.0
    %184 = vmatpush1.msra.mxu0 0.0
    %185 = vmatprep.subr.mxu0 0.0
    %186 = vmatpush1.msra.mxu0 0.0
    %187 = vmatprep.subr.mxu0 0.0
    %188 = vmatpush1.msra.mxu0 0.0
    %189 = vmatprep.subr.mxu0 0.0
    %190 = vmatpush1.msra.mxu0 0.0
    %191 = vmatprep.subr.mxu0 0.0
    %192 = vmatpush1.msra.mxu0 0.0
    %193 = vmatprep.subr.mxu0 0.0
    %194 = vmatpush1.msra.mxu0 0.0
    %195 = vmatprep.subr.mxu0 0.0
    %196 = vmatpush1.msra.mxu0 0.0
    %197 = vmatprep.subr.mxu0 0.0
    %198 = vmatpush1.msra.mxu0 0.0
    %199 = vmatprep.subr.mxu0 0.0
    %200 = vmatpush1.msra.mxu0 0.0
    %201 = vmatprep.subr.mxu0 0.0
    %202 = vmatpush1.msra.mxu0 0.0
    %203 = vmatprep.subr.mxu0 0.0
    %204 = vmatpush1.msra.mxu0 0.0
    %205 = vmatprep.subr.mxu0 0.0
    %206 = vmatpush1.msra.mxu0 0.0
    %207 = vmatprep.subr.mxu0 0.0
    %208 = vmatpush1.msra.mxu0 0.0
    %209 = vmatprep.subr.mxu0 0.0
    %210 = vmatpush1.msra.mxu0 0.0
    %211 = vmatprep.subr.mxu0 0.0
    %212 = vmatpush1.msra.mxu0 0.0
    %213 = vmatprep.subr.mxu0 0.0
    %214 = vmatpush1.msra.mxu0 0.0
    %215 = vmatprep.mubr.f32.mxu0 0.0
    %216 = vmatmul.mubr.f32.gmra.mrb[0].mxu0 %v57
    %v217 = vpop.f32.mrb[0].mxu0
    %v218 = vadd.f32 %v134, %v217
    %v219 = vpop.f32.mrb[0].mxu0
    %v220 = vadd.f32 %v138, %v219
    %221 = vmatprep.mubr.f32.mxu0 0.0
    %222 = vmatmul.mubr.f32.gmra.mrb[0].mxu0 %v58
    %v223 = vpop.f32.mrb[0].mxu0
    %v224 = vadd.f32 %v134, %v223
    %v225 = vpop.f32.mrb[0].mxu0
    %v226 = vadd.f32 %v138, %v225
    %227 = vmatprep.mubr.f32.mxu0 0.0
    %228 = vmatmul.mubr.f32.gmra.mrb[0].mxu0 %v59
    %v229 = vpop.f32.mrb[0].mxu0
    %v230 = vadd.f32 %v134, %v229
    %v231 = vpop.f32.mrb[0].mxu0
    %v232 = vadd.f32 %v138, %v231
    %233 = vmatprep.mubr.f32.mxu0 0.0
    %234 = vmatmul.mubr.f32.gmra.mrb[0].mxu0 %v60
    %v235 = vpop.f32.mrb[0].mxu0
    %v236 = vadd.f32 %v134, %v235
    %v237 = vpop.f32.mrb[0].mxu0
    %v238 = vadd.f32 %v138, %v237
    %239 = vmatprep.mubr.f32.mxu0 0.0
    %240 = vmatmul.mubr.f32.gmra.mrb[0].mxu0 %v61
    %v241 = vpop.f32.mrb[0].mxu0
    %v242 = vadd.f32 %v134, %v241
    %v243 = vpop.f32.mrb[0].mxu0
    %v244 = vadd.f32 %v138, %v243
    %245 = vmatprep.mubr.f32.mxu0 0.0
    %246 = vmatmul.mubr.f32.gmra.mrb[0].mxu0 %v62
    %v247 = vpop.f32.mrb[0].mxu0
    %v248 = vadd.f32 %v134, %v247
    %v249 = vpop.f32.mrb[0].mxu0
    %v250 = vadd.f32 %v138, %v249
    %251 = vmatprep.mubr.f32.mxu0 0.0
    %252 = vmatmul.mubr.f32.gmra.mrb[0].mxu0 %v63
    %v253 = vpop.f32.mrb[0].mxu0
    %v254 = vadd.f32 %v134, %v253
    %v255 = vpop.f32.mrb[0].mxu0
    %v256 = vadd.f32 %v138, %v255
    %257 = vmatprep.mubr.f32.mxu0 0.0
    %258 = vmatmul.mubr.f32.gmra.mrb[0].mxu0 %v64
    %v259 = vpop.f32.mrb[0].mxu0
    %v260 = vadd.f32 %v134, %v259
    %v261 = vpop.f32.mrb[0].mxu0
    %v262 = vadd.f32 %v138, %v261
    %263 = vdwg.mxu0
    %264 = vmatprep.subr.mxu0 %v68
    %265 = vmatpush1.msra.mxu0 %v67
    %266 = vmatprep.subr.mxu0 %v72
    %267 = vmatpush1.msra.mxu0 %v71
    %268 = vmatprep.subr.mxu0 %v76
    %269 = vmatpush1.msra.mxu0 %v75
    %270 = vmatprep.subr.mxu0 %v80
    %271 = vmatpush1.msra.mxu0 %v79
    %272 = vmatprep.subr.mxu0 %v84
    %273 = vmatpush1.msra.mxu0 %v83
    %274 = vmatprep.subr.mxu0 %v88
    %275 = vmatpush1.msra.mxu0 %v87
    %276 = vmatprep.subr.mxu0 %v92
    %277 = vmatpush1.msra.mxu0 %v91
    %278 = vmatprep.subr.mxu0 %v96
    %279 = vmatpush1.msra.mxu0 %v95
    %280 = vmatprep.subr.mxu0 %v100
    %281 = vmatpush1.msra.mxu0 %v99
    %282 = vmatprep.subr.mxu0 %v104
    %283 = vmatpush1.msra.mxu0 %v103
    %284 = vmatprep.subr.mxu0 %v108
    %285 = vmatpush1.msra.mxu0 %v107
    %286 = vmatprep.subr.mxu0 %v112
    %287 = vmatpush1.msra.mxu0 %v111
    %288 = vmatprep.subr.mxu0 %v116
    %289 = vmatpush1.msra.mxu0 %v115
    %290 = vmatprep.subr.mxu0 %v120
    %291 = vmatpush1.msra.mxu0 %v119
    %292 = vmatprep.subr.mxu0 %v124
    %293 = vmatpush1.msra.mxu0 %v123
    %294 = vmatprep.subr.mxu0 %v128
    %295 = vmatpush1.msra.mxu0 %v127
    %296 = vmatprep.subr.mxu0 0.0
    %297 = vmatpush1.msra.mxu0 0.0
    %298 = vmatprep.subr.mxu0 0.0
    %299 = vmatpush1.msra.mxu0 0.0
    %300 = vmatprep.subr.mxu0 0.0
    %301 = vmatpush1.msra.mxu0 0.0
    %302 = vmatprep.subr.mxu0 0.0
    %303 = vmatpush1.msra.mxu0 0.0
    %304 = vmatprep.subr.mxu0 0.0
    %305 = vmatpush1.msra.mxu0 0.0
    %306 = vmatprep.subr.mxu0 0.0
    %307 = vmatpush1.msra.mxu0 0.0
    %308 = vmatprep.subr.mxu0 0.0
    %309 = vmatpush1.msra.mxu0 0.0
    %310 = vmatprep.subr.mxu0 0.0
    %311 = vmatpush1.msra.mxu0 0.0
    %312 = vmatprep.subr.mxu0 0.0
    %313 = vmatpush1.msra.mxu0 0.0
    %314 = vmatprep.subr.mxu0 0.0
    %315 = vmatpush1.msra.mxu0 0.0
    %316 = vmatprep.subr.mxu0 0.0
    %317 = vmatpush1.msra.mxu0 0.0
    %318 = vmatprep.subr.mxu0 0.0
    %319 = vmatpush1.msra.mxu0 0.0
    %320 = vmatprep.subr.mxu0 0.0
    %321 = vmatpush1.msra.mxu0 0.0
    %322 = vmatprep.subr.mxu0 0.0
    %323 = vmatpush1.msra.mxu0 0.0
    %324 = vmatprep.subr.mxu0 0.0
    %325 = vmatpush1.msra.mxu0 0.0
    %326 = vmatprep.subr.mxu0 0.0
    %327 = vmatpush1.msra.mxu0 0.0
    %328 = vmatprep.mubr.f32.mxu0 0.0
    %329 = vmatmul.mubr.f32.gmra.mrb[0].mxu0 %v57
    %v330 = vpop.f32.mrb[0].mxu0
    %v331 = vadd.f32 %v142, %v330
    %v332 = vpop.f32.mrb[0].mxu0
    %v333 = vadd.f32 %v146, %v332
    %334 = vmatprep.mubr.f32.mxu0 0.0
    %335 = vmatmul.mubr.f32.gmra.mrb[0].mxu0 %v58
    %v336 = vpop.f32.mrb[0].mxu0
    %v337 = vadd.f32 %v142, %v336
    %v338 = vpop.f32.mrb[0].mxu0
    %v339 = vadd.f32 %v146, %v338
    %340 = vmatprep.mubr.f32.mxu0 0.0
    %341 = vmatmul.mubr.f32.gmra.mrb[0].mxu0 %v59
    %v342 = vpop.f32.mrb[0].mxu0
    %v343 = vadd.f32 %v142, %v342
    %v344 = vpop.f32.mrb[0].mxu0
    %v345 = vadd.f32 %v146, %v344
    %346 = vmatprep.mubr.f32.mxu0 0.0
    %347 = vmatmul.mubr.f32.gmra.mrb[0].mxu0 %v60
    %v348 = vpop.f32.mrb[0].mxu0
    %v349 = vadd.f32 %v142, %v348
    %v350 = vpop.f32.mrb[0].mxu0
    %v351 = vadd.f32 %v146, %v350
    %352 = vmatprep.mubr.f32.mxu0 0.0
    %353 = vmatmul.mubr.f32.gmra.mrb[0].mxu0 %v61
    %v354 = vpop.f32.mrb[0].mxu0
    %v355 = vadd.f32 %v142, %v354
    %v356 = vpop.f32.mrb[0].mxu0
    %v357 = vadd.f32 %v146, %v356
    %358 = vmatprep.mubr.f32.mxu0 0.0
    %359 = vmatmul.mubr.f32.gmra.mrb[0].mxu0 %v62
    %v360 = vpop.f32.mrb[0].mxu0
    %v361 = vadd.f32 %v142, %v360
    %v362 = vpop.f32.mrb[0].mxu0
    %v363 = vadd.f32 %v146, %v362
    %364 = vmatprep.mubr.f32.mxu0 0.0
    %365 = vmatmul.mubr.f32.gmra.mrb[0].mxu0 %v63
    %v366 = vpop.f32.mrb[0].mxu0
    %v367 = vadd.f32 %v142, %v366
    %v368 = vpop.f32.mrb[0].mxu0
    %v369 = vadd.f32 %v146, %v368
    %370 = vmatprep.mubr.f32.mxu0 0.0
    %371 = vmatmul.mubr.f32.gmra.mrb[0].mxu0 %v64
    %v372 = vpop.f32.mrb[0].mxu0
    %v373 = vadd.f32 %v142, %v372
    %v374 = vpop.f32.mrb[0].mxu0
    %v375 = vadd.f32 %v146, %v374
    %376 = vdwg.mxu0
    %377 = vst [vmem:[#allocation2] sm:$0xff] %v218
    %378 = vst [vmem:[#allocation2 + $0x8] sm:$0xff] %v220
    %379 = vst [vmem:[#allocation2 + $0x10] sm:$0xff] %v331
    %380 = vst [vmem:[#allocation2 + $0x18] sm:$0xff] %v333
    %381 = vst [vmem:[#allocation2 + $0x20] sm:$0xff] %v224
    %382 = vst [vmem:[#allocation2 + $0x28] sm:$0xff] %v226
    %383 = vst [vmem:[#allocation2 + $0x30] sm:$0xff] %v337
    %384 = vst [vmem:[#allocation2 + $0x38] sm:$0xff] %v339
    %385 = vst [vmem:[#allocation2 + $0x40] sm:$0xff] %v230
    %386 = vst [vmem:[#allocation2 + $0x48] sm:$0xff] %v232
    %387 = vst [vmem:[#allocation2 + $0x50] sm:$0xff] %v343
    %388 = vst [vmem:[#allocation2 + $0x58] sm:$0xff] %v345
    %389 = vst [vmem:[#allocation2 + $0x60] sm:$0xff] %v236
    %390 = vst [vmem:[#allocation2 + $0x68] sm:$0xff] %v238
    %391 = vst [vmem:[#allocation2 + $0x70] sm:$0xff] %v349
    %392 = vst [vmem:[#allocation2 + $0x78] sm:$0xff] %v351
    %393 = vst [vmem:[#allocation2 + $0x80] sm:$0xff] %v242
    %394 = vst [vmem:[#allocation2 + $0x88] sm:$0xff] %v244
    %395 = vst [vmem:[#allocation2 + $0x90] sm:$0xff] %v355
    %396 = vst [vmem:[#allocation2 + $0x98] sm:$0xff] %v357
    %397 = vst [vmem:[#allocation2 + $0xa0] sm:$0xff] %v248
    %398 = vst [vmem:[#allocation2 + $0xa8] sm:$0xff] %v250
    %399 = vst [vmem:[#allocation2 + $0xb0] sm:$0xff] %v361
    %400 = vst [vmem:[#allocation2 + $0xb8] sm:$0xff] %v363
    %401 = vst [vmem:[#allocation2 + $0xc0] sm:$0xff] %v254
    %402 = vst [vmem:[#allocation2 + $0xc8] sm:$0xff] %v256
    %403 = vst [vmem:[#allocation2 + $0xd0] sm:$0xff] %v367
    %404 = vst [vmem:[#allocation2 + $0xd8] sm:$0xff] %v369
    %405 = vst [vmem:[#allocation2 + $0xe0] sm:$0xff] %v260
    %406 = vst [vmem:[#allocation2 + $0xe8] sm:$0xff] %v262
    %407 = vst [vmem:[#allocation2 + $0xf0] sm:$0xff] %v373
    %408 = vst [vmem:[#allocation2 + $0xf8] sm:$0xff] %v375
    %s409 = smul.u32 8, 16
    %s410 = smul.u32 %s409, 4
    %s411 = sshll.u32 %s410, 4
    %412 = dma.done [#allocation5], %s411
    %v413 = vld [vmem:[#allocation2] sm:$0xff]
    %v414 = vld [vmem:[#allocation2 + $0x8] sm:$0xff]
    %v415 = vld [vmem:[#allocation2 + $0x10] sm:$0xff]
    %v416 = vld [vmem:[#allocation2 + $0x18] sm:$0xff]
    %v417 = vld [vmem:[#allocation3] sm:$0xff]
    %v418 = vld [vmem:[#allocation3 + $0x8] sm:$0xff]
    %v419 = vld [vmem:[#allocation3 + $0x10] sm:$0xff]
    %v420 = vld [vmem:[#allocation3 + $0x18] sm:$0xff]
    %v421 = vld [vmem:[#allocation3 + $0x20] sm:$0xff]
    %v422 = vld [vmem:[#allocation3 + $0x28] sm:$0xff]
    %v423 = vld [vmem:[#allocation3 + $0x30] sm:$0xff]
    %v424 = vld [vmem:[#allocation3 + $0x38] sm:$0xff]
    %v425 = vld [vmem:[#allocation3 + $0x40] sm:$0xff]
    %v426 = vld [vmem:[#allocation3 + $0x48] sm:$0xff]
    %v427 = vld [vmem:[#allocation3 + $0x50] sm:$0xff]
    %v428 = vld [vmem:[#allocation3 + $0x58] sm:$0xff]
    %v429 = vld [vmem:[#allocation3 + $0x60] sm:$0xff]
    %v430 = vld [vmem:[#allocation3 + $0x68] sm:$0xff]
    %v431 = vld [vmem:[#allocation3 + $0x70] sm:$0xff]
    %v432 = vld [vmem:[#allocation3 + $0x78] sm:$0xff]
    %v433 = vld [vmem:[#allocation3 + $0x80] sm:$0xff]
    %v434 = vld [vmem:[#allocation3 + $0x88] sm:$0xff]
    %v435 = vld [vmem:[#allocation3 + $0x90] sm:$0xff]
    %v436 = vld [vmem:[#allocation3 + $0x98] sm:$0xff]
    %v437 = vld [vmem:[#allocation3 + $0xa0] sm:$0xff]
    %v438 = vld [vmem:[#allocation3 + $0xa8] sm:$0xff]
    %v439 = vld [vmem:[#allocation3 + $0xb0] sm:$0xff]
    %v440 = vld [vmem:[#allocation3 + $0xb8] sm:$0xff]
    %v441 = vld [vmem:[#allocation3 + $0xc0] sm:$0xff]
    %v442 = vld [vmem:[#allocation3 + $0xc8] sm:$0xff]
    %v443 = vld [vmem:[#allocation3 + $0xd0] sm:$0xff]
    %v444 = vld [vmem:[#allocation3 + $0xd8] sm:$0xff]
    %v445 = vld [vmem:[#allocation3 + $0xe0] sm:$0xff]
    %v446 = vld [vmem:[#allocation3 + $0xe8] sm:$0xff]
    %v447 = vld [vmem:[#allocation3 + $0xf0] sm:$0xff]
    %v448 = vld [vmem:[#allocation3 + $0xf8] sm:$0xff]
    %v449 = vld [vmem:[#allocation3 + $0x100] sm:$0xff]
    %v450 = vld [vmem:[#allocation3 + $0x108] sm:$0xff]
    %v451 = vld [vmem:[#allocation3 + $0x110] sm:$0xff]
    %v452 = vld [vmem:[#allocation3 + $0x118] sm:$0xff]
    %v453 = vld [vmem:[#allocation3 + $0x120] sm:$0xff]
    %v454 = vld [vmem:[#allocation3 + $0x128] sm:$0xff]
    %v455 = vld [vmem:[#allocation3 + $0x130] sm:$0xff]
    %v456 = vld [vmem:[#allocation3 + $0x138] sm:$0xff]
    %v457 = vld [vmem:[#allocation3 + $0x140] sm:$0xff]
    %v458 = vld [vmem:[#allocation3 + $0x148] sm:$0xff]
    %v459 = vld [vmem:[#allocation3 + $0x150] sm:$0xff]
    %v460 = vld [vmem:[#allocation3 + $0x158] sm:$0xff]
    %v461 = vld [vmem:[#allocation3 + $0x160] sm:$0xff]
    %v462 = vld [vmem:[#allocation3 + $0x168] sm:$0xff]
    %v463 = vld [vmem:[#allocation3 + $0x170] sm:$0xff]
    %v464 = vld [vmem:[#allocation3 + $0x178] sm:$0xff]
    %v465 = vld [vmem:[#allocation3 + $0x180] sm:$0xff]
    %v466 = vld [vmem:[#allocation3 + $0x188] sm:$0xff]
    %v467 = vld [vmem:[#allocation3 + $0x190] sm:$0xff]
    %v468 = vld [vmem:[#allocation3 + $0x198] sm:$0xff]
    %v469 = vld [vmem:[#allocation3 + $0x1a0] sm:$0xff]
    %v470 = vld [vmem:[#allocation3 + $0x1a8] sm:$0xff]
    %v471 = vld [vmem:[#allocation3 + $0x1b0] sm:$0xff]
    %v472 = vld [vmem:[#allocation3 + $0x1b8] sm:$0xff]
    %v473 = vld [vmem:[#allocation3 + $0x1c0] sm:$0xff]
    %v474 = vld [vmem:[#allocation3 + $0x1c8] sm:$0xff]
    %v475 = vld [vmem:[#allocation3 + $0x1d0] sm:$0xff]
    %v476 = vld [vmem:[#allocation3 + $0x1d8] sm:$0xff]
    %v477 = vld [vmem:[#allocation3 + $0x1e0] sm:$0xff]
    %v478 = vld [vmem:[#allocation3 + $0x1e8] sm:$0xff]
    %v479 = vld [vmem:[#allocation3 + $0x1f0] sm:$0xff]
    %v480 = vld [vmem:[#allocation3 + $0x1f8] sm:$0xff]
    %481 = vmatprep.subr.mxu0 %v418
    %482 = vmatpush1.msra.mxu0 %v417
    %483 = vmatprep.subr.mxu0 %v422
    %484 = vmatpush1.msra.mxu0 %v421
    %485 = vmatprep.subr.mxu0 %v426
    %486 = vmatpush1.msra.mxu0 %v425
    %487 = vmatprep.subr.mxu0 %v430
    %488 = vmatpush1.msra.mxu0 %v429
    %489 = vmatprep.subr.mxu0 %v434
    %490 = vmatpush1.msra.mxu0 %v433
    %491 = vmatprep.subr.mxu0 %v438
    %492 = vmatpush1.msra.mxu0 %v437
    %493 = vmatprep.subr.mxu0 %v442
    %494 = vmatpush1.msra.mxu0 %v441
    %495 = vmatprep.subr.mxu0 %v446
    %496 = vmatpush1.msra.mxu0 %v445
    %497 = vmatprep.subr.mxu0 %v450
    %498 = vmatpush1.msra.mxu0 %v449
    %499 = vmatprep.subr.mxu0 %v454
    %500 = vmatpush1.msra.mxu0 %v453
    %501 = vmatprep.subr.mxu0 %v458
    %502 = vmatpush1.msra.mxu0 %v457
    %503 = vmatprep.subr.mxu0 %v462
    %504 = vmatpush1.msra.mxu0 %v461
    %505 = vmatprep.subr.mxu0 %v466
    %506 = vmatpush1.msra.mxu0 %v465
    %507 = vmatprep.subr.mxu0 %v470
    %508 = vmatpush1.msra.mxu0 %v469
    %509 = vmatprep.subr.mxu0 %v474
    %510 = vmatpush1.msra.mxu0 %v473
    %511 = vmatprep.subr.mxu0 %v478
    %512 = vmatpush1.msra.mxu0 %v477
    %513 = vmatprep.subr.mxu0 0.0
    %514 = vmatpush1.msra.mxu0 0.0
    %515 = vmatprep.subr.mxu0 0.0
    %516 = vmatpush1.msra.mxu0 0.0
    %517 = vmatprep.subr.mxu0 0.0
    %518 = vmatpush1.msra.mxu0 0.0
    %519 = vmatprep.subr.mxu0 0.0
    %520 = vmatpush1.msra.mxu0 0.0
    %521 = vmatprep.subr.mxu0 0.0
    %522 = vmatpush1.msra.mxu0 0.0
    %523 = vmatprep.subr.mxu0 0.0
    %524 = vmatpush1.msra.mxu0 0.0
    %525 = vmatprep.subr.mxu0 0.0
    %526 = vmatpush1.msra.mxu0 0.0
    %527 = vmatprep.subr.mxu0 0.0
    %528 = vmatpush1.msra.mxu0 0.0
    %529 = vmatprep.subr.mxu0 0.0
    %530 = vmatpush1.msra.mxu0 0.0
    %531 = vmatprep.subr.mxu0 0.0
    %532 = vmatpush1.msra.mxu0 0.0
    %533 = vmatprep.subr.mxu0 0.0
    %534 = vmatpush1.msra.mxu0 0.0
    %535 = vmatprep.subr.mxu0 0.0
    %536 = vmatpush1.msra.mxu0 0.0
    %537 = vmatprep.subr.mxu0 0.0
    %538 = vmatpush1.msra.mxu0 0.0
    %539 = vmatprep.subr.mxu0 0.0
    %540 = vmatpush1.msra.mxu0 0.0
    %541 = vmatprep.subr.mxu0 0.0
    %542 = vmatpush1.msra.mxu0 0.0
    %543 = vmatprep.subr.mxu0 0.0
    %544 = vmatpush1.msra.mxu0 0.0
    %545 = vmatprep.mubr.f32.mxu0 0.0
    %546 = vmatmul.mubr.f32.gmra.mrb[0].mxu0 0.0
    %v547 = vpop.f32.mrb[0].mxu0
    %v548 = vadd.f32 0.0, %v547
    %v549 = vpop.f32.mrb[0].mxu0
    %v550 = vadd.f32 0.0, %v549
    %551 = vdwg.mxu0
    %552 = vmatprep.subr.mxu0 %v420
    %553 = vmatpush1.msra.mxu0 %v419
    %554 = vmatprep.subr.mxu0 %v424
    %555 = vmatpush1.msra.mxu0 %v423
    %556 = vmatprep.subr.mxu0 %v428
    %557 = vmatpush1.msra.mxu0 %v427
    %558 = vmatprep.subr.mxu0 %v432
    %559 = vmatpush1.msra.mxu0 %v431
    %560 = vmatprep.subr.mxu0 %v436
    %561 = vmatpush1.msra.mxu0 %v435
    %562 = vmatprep.subr.mxu0 %v440
    %563 = vmatpush1.msra.mxu0 %v439
    %564 = vmatprep.subr.mxu0 %v444
    %565 = vmatpush1.msra.mxu0 %v443
    %566 = vmatprep.subr.mxu0 %v448
    %567 = vmatpush1.msra.mxu0 %v447
    %568 = vmatprep.subr.mxu0 %v452
    %569 = vmatpush1.msra.mxu0 %v451
    %570 = vmatprep.subr.mxu0 %v456
    %571 = vmatpush1.msra.mxu0 %v455
    %572 = vmatprep.subr.mxu0 %v460
    %573 = vmatpush1.msra.mxu0 %v459
    %574 = vmatprep.subr.mxu0 %v464
    %575 = vmatpush1.msra.mxu0 %v463
    %576 = vmatprep.subr.mxu0 %v468
    %577 = vmatpush1.msra.mxu0 %v467
    %578 = vmatprep.subr.mxu0 %v472
    %579 = vmatpush1.msra.mxu0 %v471
    %580 = vmatprep.subr.mxu0 %v476
    %581 = vmatpush1.msra.mxu0 %v475
    %582 = vmatprep.subr.mxu0 %v480
    %583 = vmatpush1.msra.mxu0 %v479
    %584 = vmatprep.subr.mxu0 0.0
    %585 = vmatpush1.msra.mxu0 0.0
    %586 = vmatprep.subr.mxu0 0.0
    %587 = vmatpush1.msra.mxu0 0.0
    %588 = vmatprep.subr.mxu0 0.0
    %589 = vmatpush1.msra.mxu0 0.0
    %590 = vmatprep.subr.mxu0 0.0
    %591 = vmatpush1.msra.mxu0 0.0
    %592 = vmatprep.subr.mxu0 0.0
    %593 = vmatpush1.msra.mxu0 0.0
    %594 = vmatprep.subr.mxu0 0.0
    %595 = vmatpush1.msra.mxu0 0.0
    %596 = vmatprep.subr.mxu0 0.0
    %597 = vmatpush1.msra.mxu0 0.0
    %598 = vmatprep.subr.mxu0 0.0
    %599 = vmatpush1.msra.mxu0 0.0
    %600 = vmatprep.subr.mxu0 0.0
    %601 = vmatpush1.msra.mxu0 0.0
    %602 = vmatprep.subr.mxu0 0.0
    %603 = vmatpush1.msra.mxu0 0.0
    %604 = vmatprep.subr.mxu0 0.0
    %605 = vmatpush1.msra.mxu0 0.0
    %606 = vmatprep.subr.mxu0 0.0
    %607 = vmatpush1.msra.mxu0 0.0
    %608 = vmatprep.subr.mxu0 0.0
    %609 = vmatpush1.msra.mxu0 0.0
    %610 = vmatprep.subr.mxu0 0.0
    %611 = vmatpush1.msra.mxu0 0.0
    %612 = vmatprep.subr.mxu0 0.0
    %613 = vmatpush1.msra.mxu0 0.0
    %614 = vmatprep.subr.mxu0 0.0
    %615 = vmatpush1.msra.mxu0 0.0
    %616 = vmatprep.mubr.f32.mxu0 0.0
    %617 = vmatmul.mubr.f32.gmra.mrb[0].mxu0 0.0
    %v618 = vpop.f32.mrb[0].mxu0
    %v619 = vadd.f32 0.0, %v618
    %v620 = vpop.f32.mrb[0].mxu0
    %v621 = vadd.f32 0.0, %v620
    %622 = vdwg.mxu0
    %v623 = vadd.f32 %v413, %v548
    %v624 = vadd.f32 %v414, %v550
    %v625 = vadd.f32 %v415, %v619
    %v626 = vadd.f32 %v416, %v621
    %v627 = vxor.u32 %v623, 2147483648
    %v628 = vxor.u32 %v624, 2147483648
    %v629 = vxor.u32 %v625, 2147483648
    %v630 = vmul.f32 %v627, 1.442695
    %v631 = vpow.pop %v630
    %v632 = vmul.f32 %v628, 1.442695
    %v633 = vpow.pop %v632
    %v634 = vmul.f32 %v629, 1.442695
    %v635 = vpow.pop %v634
    %v636 = vadd.f32 %v631, 1.0
    %v637 = vadd.f32 %v633, 1.0
    %v638 = vadd.f32 %v635, 1.0
    %v639 = vrcp.pop %v636
    %v640 = vmul.f32 1.0, %v639
    %v641 = vrcp.pop %v637
    %v642 = vmul.f32 1.0, %v641
    %v643 = vrcp.pop %v638
    %v644 = vmul.f32 1.0, %v643
    %v645 = vtanh.pop %v626
    %v646 = vmul.f32 %v642, 0.0
    %v647 = vmul.f32 %v640, %v645
    %v648 = vadd.f32 %v646, %v647
    %v649 = vtanh.pop %v648
    %v650 = vmul.f32 %v644, %v649
    %s651 = scalar_lea.vmem [#allocation2], 32
    %v652 = vld [vmem:[%s651] sm:$0xff]
    %v653 = vld [vmem:[%s651 + $0x8] sm:$0xff]
    %v654 = vld [vmem:[%s651 + $0x10] sm:$0xff]
    %v655 = vld [vmem:[%s651 + $0x18] sm:$0xff]
    %656 = vmatprep.subr.mxu0 %v418
    %657 = vmatpush1.msra.mxu0 %v417
    %658 = vmatprep.subr.mxu0 %v422
    %659 = vmatpush1.msra.mxu0 %v421
    %660 = vmatprep.subr.mxu0 %v426
    %661 = vmatpush1.msra.mxu0 %v425
    %662 = vmatprep.subr.mxu0 %v430
    %663 = vmatpush1.msra.mxu0 %v429
    %664 = vmatprep.subr.mxu0 %v434
    %665 = vmatpush1.msra.mxu0 %v433
    %666 = vmatprep.subr.mxu0 %v438
    %667 = vmatpush1.msra.mxu0 %v437
    %668 = vmatprep.subr.mxu0 %v442
    %669 = vmatpush1.msra.mxu0 %v441
    %670 = vmatprep.subr.mxu0 %v446
    %671 = vmatpush1.msra.mxu0 %v445
    %672 = vmatprep.subr.mxu0 %v450
    %673 = vmatpush1.msra.mxu0 %v449
    %674 = vmatprep.subr.mxu0 %v454
    %675 = vmatpush1.msra.mxu0 %v453
    %676 = vmatprep.subr.mxu0 %v458
    %677 = vmatpush1.msra.mxu0 %v457
    %678 = vmatprep.subr.mxu0 %v462
    %679 = vmatpush1.msra.mxu0 %v461
    %680 = vmatprep.subr.mxu0 %v466
    %681 = vmatpush1.msra.mxu0 %v465
    %682 = vmatprep.subr.mxu0 %v470
    %683 = vmatpush1.msra.mxu0 %v469
    %684 = vmatprep.subr.mxu0 %v474
    %685 = vmatpush1.msra.mxu0 %v473
    %686 = vmatprep.subr.mxu0 %v478
    %687 = vmatpush1.msra.mxu0 %v477
    %688 = vmatprep.subr.mxu0 0.0
    %689 = vmatpush1.msra.mxu0 0.0
    %690 = vmatprep.subr.mxu0 0.0
    %691 = vmatpush1.msra.mxu0 0.0
    %692 = vmatprep.subr.mxu0 0.0
    %693 = vmatpush1.msra.mxu0 0.0
    %694 = vmatprep.subr.mxu0 0.0
    %695 = vmatpush1.msra.mxu0 0.0
    %696 = vmatprep.subr.mxu0 0.0
    %697 = vmatpush1.msra.mxu0 0.0
    %698 = vmatprep.subr.mxu0 0.0
    %699 = vmatpush1.msra.mxu0 0.0
    %700 = vmatprep.subr.mxu0 0.0
    %701 = vmatpush1.msra.mxu0 0.0
    %702 = vmatprep.subr.mxu0 0.0
    %703 = vmatpush1.msra.mxu0 0.0
    %704 = vmatprep.subr.mxu0 0.0
    %705 = vmatpush1.msra.mxu0 0.0
    %706 = vmatprep.subr.mxu0 0.0
    %707 = vmatpush1.msra.mxu0 0.0
    %708 = vmatprep.subr.mxu0 0.0
    %709 = vmatpush1.msra.mxu0 0.0
    %710 = vmatprep.subr.mxu0 0.0
    %711 = vmatpush1.msra.mxu0 0.0
    %712 = vmatprep.subr.mxu0 0.0
    %713 = vmatpush1.msra.mxu0 0.0
    %714 = vmatprep.subr.mxu0 0.0
    %715 = vmatpush1.msra.mxu0 0.0
    %716 = vmatprep.subr.mxu0 0.0
    %717 = vmatpush1.msra.mxu0 0.0
    %718 = vmatprep.subr.mxu0 0.0
    %719 = vmatpush1.msra.mxu0 0.0
    %720 = vmatprep.mubr.f32.mxu0 0.0
    %721 = vmatmul.mubr.f32.gmra.mrb[0].mxu0 %v650
    %v722 = vpop.f32.mrb[0].mxu0
    %v723 = vadd.f32 0.0, %v722
    %v724 = vpop.f32.mrb[0].mxu0
    %v725 = vadd.f32 0.0, %v724
    %726 = vdwg.mxu0
    %727 = vmatprep.subr.mxu0 %v420
    %728 = vmatpush1.msra.mxu0 %v419
    %729 = vmatprep.subr.mxu0 %v424
    %730 = vmatpush1.msra.mxu0 %v423
    %731 = vmatprep.subr.mxu0 %v428
    %732 = vmatpush1.msra.mxu0 %v427
    %733 = vmatprep.subr.mxu0 %v432
    %734 = vmatpush1.msra.mxu0 %v431
    %735 = vmatprep.subr.mxu0 %v436
    %736 = vmatpush1.msra.mxu0 %v435
    %737 = vmatprep.subr.mxu0 %v440
    %738 = vmatpush1.msra.mxu0 %v439
    %739 = vmatprep.subr.mxu0 %v444
    %740 = vmatpush1.msra.mxu0 %v443
    %741 = vmatprep.subr.mxu0 %v448
    %742 = vmatpush1.msra.mxu0 %v447
    %743 = vmatprep.subr.mxu0 %v452
    %744 = vmatpush1.msra.mxu0 %v451
    %745 = vmatprep.subr.mxu0 %v456
    %746 = vmatpush1.msra.mxu0 %v455
    %747 = vmatprep.subr.mxu0 %v460
    %748 = vmatpush1.msra.mxu0 %v459
    %749 = vmatprep.subr.mxu0 %v464
    %750 = vmatpush1.msra.mxu0 %v463
    %751 = vmatprep.subr.mxu0 %v468
    %752 = vmatpush1.msra.mxu0 %v467
    %753 = vmatprep.subr.mxu0 %v472
    %754 = vmatpush1.msra.mxu0 %v471
    %755 = vmatprep.subr.mxu0 %v476
    %756 = vmatpush1.msra.mxu0 %v475
    %757 = vmatprep.subr.mxu0 %v480
    %758 = vmatpush1.msra.mxu0 %v479
    %759 = vmatprep.subr.mxu0 0.0
    %760 = vmatpush1.msra.mxu0 0.0
    %761 = vmatprep.subr.mxu0 0.0
    %762 = vmatpush1.msra.mxu0 0.0
    %763 = vmatprep.subr.mxu0 0.0
    %764 = vmatpush1.msra.mxu0 0.0
    %765 = vmatprep.subr.mxu0 0.0
    %766 = vmatpush1.msra.mxu0 0.0
    %767 = vmatprep.subr.mxu0 0.0
    %768 = vmatpush1.msra.mxu0 0.0
    %769 = vmatprep.subr.mxu0 0.0
    %770 = vmatpush1.msra.mxu0 0.0
    %771 = vmatprep.subr.mxu0 0.0
    %772 = vmatpush1.msra.mxu0 0.0
    %773 = vmatprep.subr.mxu0 0.0
    %774 = vmatpush1.msra.mxu0 0.0
    %775 = vmatprep.subr.mxu0 0.0
    %776 = vmatpush1.msra.mxu0 0.0
    %777 = vmatprep.subr.mxu0 0.0
    %778 = vmatpush1.msra.mxu0 0.0
    %779 = vmatprep.subr.mxu0 0.0
    %780 = vmatpush1.msra.mxu0 0.0
    %781 = vmatprep.subr.mxu0 0.0
    %782 = vmatpush1.msra.mxu0 0.0
    %783 = vmatprep.subr.mxu0 0.0
    %784 = vmatpush1.msra.mxu0 0.0
    %785 = vmatprep.subr.mxu0 0.0
    %786 = vmatpush1.msra.mxu0 0.0
    %787 = vmatprep.subr.mxu0 0.0
    %788 = vmatpush1.msra.mxu0 0.0
    %789 = vmatprep.subr.mxu0 0.0
    %790 = vmatpush1.msra.mxu0 0.0
    %791 = vmatprep.mubr.f32.mxu0 0.0
    %792 = vmatmul.mubr.f32.gmra.mrb[0].mxu0 %v650
    %v793 = vpop.f32.mrb[0].mxu0
    %v794 = vadd.f32 0.0, %v793
    %v795 = vpop.f32.mrb[0].mxu0
    %v796 = vadd.f32 0.0, %v795
    %797 = vdwg.mxu0
    %v798 = vadd.f32 %v652, %v723
    %v799 = vadd.f32 %v653, %v725
    %v800 = vadd.f32 %v654, %v794
    %v801 = vadd.f32 %v655, %v796
    %v802 = vxor.u32 %v798, 2147483648
    %v803 = vxor.u32 %v799, 2147483648
    %v804 = vxor.u32 %v800, 2147483648
    %v805 = vmul.f32 %v802, 1.442695
    %v806 = vpow.pop %v805
    %v807 = vmul.f32 %v803, 1.442695
    %v808 = vpow.pop %v807
    %v809 = vmul.f32 %v804, 1.442695
    %v810 = vpow.pop %v809
    %v811 = vadd.f32 %v806, 1.0
    %v812 = vadd.f32 %v808, 1.0
    %v813 = vadd.f32 %v810, 1.0
    %v814 = vrcp.pop %v811
    %v815 = vmul.f32 1.0, %v814
    %v816 = vrcp.pop %v812
    %v817 = vmul.f32 1.0, %v816
    %v818 = vrcp.pop %v813
    %v819 = vmul.f32 1.0, %v818
    %v820 = vtanh.pop %v801
    %v821 = vmul.f32 %v817, %v648
    %v822 = vmul.f32 %v815, %v820
    %v823 = vadd.f32 %v821, %v822
    %v824 = vtanh.pop %v823
    %v825 = vmul.f32 %v819, %v824
    %s826 = scalar_lea.vmem [#allocation2], 64
    %v827 = vld [vmem:[%s826] sm:$0xff]
    %v828 = vld [vmem:[%s826 + $0x8] sm:$0xff]
    %v829 = vld [vmem:[%s826 + $0x10] sm:$0xff]
    %v830 = vld [vmem:[%s826 + $0x18] sm:$0xff]
    %831 = vmatprep.subr.mxu0 %v418
    %832 = vmatpush1.msra.mxu0 %v417
    %833 = vmatprep.subr.mxu0 %v422
    %834 = vmatpush1.msra.mxu0 %v421
    %835 = vmatprep.subr.mxu0 %v426
    %836 = vmatpush1.msra.mxu0 %v425
    %837 = vmatprep.subr.mxu0 %v430
    %838 = vmatpush1.msra.mxu0 %v429
    %839 = vmatprep.subr.mxu0 %v434
    %840 = vmatpush1.msra.mxu0 %v433
    %841 = vmatprep.subr.mxu0 %v438
    %842 = vmatpush1.msra.mxu0 %v437
    %843 = vmatprep.subr.mxu0 %v442
    %844 = vmatpush1.msra.mxu0 %v441
    %845 = vmatprep.subr.mxu0 %v446
    %846 = vmatpush1.msra.mxu0 %v445
    %847 = vmatprep.subr.mxu0 %v450
    %848 = vmatpush1.msra.mxu0 %v449
    %849 = vmatprep.subr.mxu0 %v454
    %850 = vmatpush1.msra.mxu0 %v453
    %851 = vmatprep.subr.mxu0 %v458
    %852 = vmatpush1.msra.mxu0 %v457
    %853 = vmatprep.subr.mxu0 %v462
    %854 = vmatpush1.msra.mxu0 %v461
    %855 = vmatprep.subr.mxu0 %v466
    %856 = vmatpush1.msra.mxu0 %v465
    %857 = vmatprep.subr.mxu0 %v470
    %858 = vmatpush1.msra.mxu0 %v469
    %859 = vmatprep.subr.mxu0 %v474
    %860 = vmatpush1.msra.mxu0 %v473
    %861 = vmatprep.subr.mxu0 %v478
    %862 = vmatpush1.msra.mxu0 %v477
    %863 = vmatprep.subr.mxu0 0.0
    %864 = vmatpush1.msra.mxu0 0.0
    %865 = vmatprep.subr.mxu0 0.0
    %866 = vmatpush1.msra.mxu0 0.0
    %867 = vmatprep.subr.mxu0 0.0
    %868 = vmatpush1.msra.mxu0 0.0
    %869 = vmatprep.subr.mxu0 0.0
    %870 = vmatpush1.msra.mxu0 0.0
    %871 = vmatprep.subr.mxu0 0.0
    %872 = vmatpush1.msra.mxu0 0.0
    %873 = vmatprep.subr.mxu0 0.0
    %874 = vmatpush1.msra.mxu0 0.0
    %875 = vmatprep.subr.mxu0 0.0
    %876 = vmatpush1.msra.mxu0 0.0
    %877 = vmatprep.subr.mxu0 0.0
    %878 = vmatpush1.msra.mxu0 0.0
    %879 = vmatprep.subr.mxu0 0.0
    %880 = vmatpush1.msra.mxu0 0.0
    %881 = vmatprep.subr.mxu0 0.0
    %882 = vmatpush1.msra.mxu0 0.0
    %883 = vmatprep.subr.mxu0 0.0
    %884 = vmatpush1.msra.mxu0 0.0
    %885 = vmatprep.subr.mxu0 0.0
    %886 = vmatpush1.msra.mxu0 0.0
    %887 = vmatprep.subr.mxu0 0.0
    %888 = vmatpush1.msra.mxu0 0.0
    %889 = vmatprep.subr.mxu0 0.0
    %890 = vmatpush1.msra.mxu0 0.0
    %891 = vmatprep.subr.mxu0 0.0
    %892 = vmatpush1.msra.mxu0 0.0
    %893 = vmatprep.subr.mxu0 0.0
    %894 = vmatpush1.msra.mxu0 0.0
    %895 = vmatprep.mubr.f32.mxu0 0.0
    %896 = vmatmul.mubr.f32.gmra.mrb[0].mxu0 %v825
    %v897 = vpop.f32.mrb[0].mxu0
    %v898 = vadd.f32 0.0, %v897
    %v899 = vpop.f32.mrb[0].mxu0
    %v900 = vadd.f32 0.0, %v899
    %901 = vdwg.mxu0
    %902 = vmatprep.subr.mxu0 %v420
    %903 = vmatpush1.msra.mxu0 %v419
    %904 = vmatprep.subr.mxu0 %v424
    %905 = vmatpush1.msra.mxu0 %v423
    %906 = vmatprep.subr.mxu0 %v428
    %907 = vmatpush1.msra.mxu0 %v427
    %908 = vmatprep.subr.mxu0 %v432
    %909 = vmatpush1.msra.mxu0 %v431
    %910 = vmatprep.subr.mxu0 %v436
    %911 = vmatpush1.msra.mxu0 %v435
    %912 = vmatprep.subr.mxu0 %v440
    %913 = vmatpush1.msra.mxu0 %v439
    %914 = vmatprep.subr.mxu0 %v444
    %915 = vmatpush1.msra.mxu0 %v443
    %916 = vmatprep.subr.mxu0 %v448
    %917 = vmatpush1.msra.mxu0 %v447
    %918 = vmatprep.subr.mxu0 %v452
    %919 = vmatpush1.msra.mxu0 %v451
    %920 = vmatprep.subr.mxu0 %v456
    %921 = vmatpush1.msra.mxu0 %v455
    %922 = vmatprep.subr.mxu0 %v460
    %923 = vmatpush1.msra.mxu0 %v459
    %924 = vmatprep.subr.mxu0 %v464
    %925 = vmatpush1.msra.mxu0 %v463
    %926 = vmatprep.subr.mxu0 %v468
    %927 = vmatpush1.msra.mxu0 %v467
    %928 = vmatprep.subr.mxu0 %v472
    %929 = vmatpush1.msra.mxu0 %v471
    %930 = vmatprep.subr.mxu0 %v476
    %931 = vmatpush1.msra.mxu0 %v475
    %932 = vmatprep.subr.mxu0 %v480
    %933 = vmatpush1.msra.mxu0 %v479
    %934 = vmatprep.subr.mxu0 0.0
    %935 = vmatpush1.msra.mxu0 0.0
    %936 = vmatprep.subr.mxu0 0.0
    %937 = vmatpush1.msra.mxu0 0.0
    %938 = vmatprep.subr.mxu0 0.0
    %939 = vmatpush1.msra.mxu0 0.0
    %940 = vmatprep.subr.mxu0 0.0
    %941 = vmatpush1.msra.mxu0 0.0
    %942 = vmatprep.subr.mxu0 0.0
    %943 = vmatpush1.msra.mxu0 0.0
    %944 = vmatprep.subr.mxu0 0.0
    %945 = vmatpush1.msra.mxu0 0.0
    %946 = vmatprep.subr.mxu0 0.0
    %947 = vmatpush1.msra.mxu0 0.0
    %948 = vmatprep.subr.mxu0 0.0
    %949 = vmatpush1.msra.mxu0 0.0
    %950 = vmatprep.subr.mxu0 0.0
    %951 = vmatpush1.msra.mxu0 0.0
    %952 = vmatprep.subr.mxu0 0.0
    %953 = vmatpush1.msra.mxu0 0.0
    %954 = vmatprep.subr.mxu0 0.0
    %955 = vmatpush1.msra.mxu0 0.0
    %956 = vmatprep.subr.mxu0 0.0
    %957 = vmatpush1.msra.mxu0 0.0
    %958 = vmatprep.subr.mxu0 0.0
    %959 = vmatpush1.msra.mxu0 0.0
    %960 = vmatprep.subr.mxu0 0.0
    %961 = vmatpush1.msra.mxu0 0.0
    %962 = vmatprep.subr.mxu0 0.0
    %963 = vmatpush1.msra.mxu0 0.0
    %964 = vmatprep.subr.mxu0 0.0
    %965 = vmatpush1.msra.mxu0 0.0
    %966 = vmatprep.mubr.f32.mxu0 0.0
    %967 = vmatmul.mubr.f32.gmra.mrb[0].mxu0 %v825
    %v968 = vpop.f32.mrb[0].mxu0
    %v969 = vadd.f32 0.0, %v968
    %v970 = vpop.f32.mrb[0].mxu0
    %v971 = vadd.f32 0.0, %v970
    %972 = vdwg.mxu0
    %v973 = vadd.f32 %v827, %v898
    %v974 = vadd.f32 %v828, %v900
    %v975 = vadd.f32 %v829, %v969
    %v976 = vadd.f32 %v830, %v971
    %v977 = vxor.u32 %v973, 2147483648
    %v978 = vxor.u32 %v974, 2147483648
    %v979 = vxor.u32 %v975, 2147483648
    %v980 = vmul.f32 %v977, 1.442695
    %v981 = vpow.pop %v980
    %v982 = vmul.f32 %v978, 1.442695
    %v983 = vpow.pop %v982
    %v984 = vmul.f32 %v979, 1.442695
    %v985 = vpow.pop %v984
    %v986 = vadd.f32 %v981, 1.0
    %v987 = vadd.f32 %v983, 1.0
    %v988 = vadd.f32 %v985, 1.0
    %v989 = vrcp.pop %v986
    %v990 = vmul.f32 1.0, %v989
    %v991 = vrcp.pop %v987
    %v992 = vmul.f32 1.0, %v991
    %v993 = vrcp.pop %v988
    %v994 = vmul.f32 1.0, %v993
    %v995 = vtanh.pop %v976
    %v996 = vmul.f32 %v992, %v823
    %v997 = vmul.f32 %v990, %v995
    %v998 = vadd.f32 %v996, %v997
    %v999 = vtanh.pop %v998
    %v1000 = vmul.f32 %v994, %v999
    %s1001 = scalar_lea.vmem [#allocation2], 96
    %v1002 = vld [vmem:[%s1001] sm:$0xff]
    %v1003 = vld [vmem:[%s1001 + $0x8] sm:$0xff]
    %v1004 = vld [vmem:[%s1001 + $0x10] sm:$0xff]
    %v1005 = vld [vmem:[%s1001 + $0x18] sm:$0xff]
    %1006 = vmatprep.subr.mxu0 %v418
    %1007 = vmatpush1.msra.mxu0 %v417
    %1008 = vmatprep.subr.mxu0 %v422
    %1009 = vmatpush1.msra.mxu0 %v421
    %1010 = vmatprep.subr.mxu0 %v426
    %1011 = vmatpush1.msra.mxu0 %v425
    %1012 = vmatprep.subr.mxu0 %v430
    %1013 = vmatpush1.msra.mxu0 %v429
    %1014 = vmatprep.subr.mxu0 %v434
    %1015 = vmatpush1.msra.mxu0 %v433
    %1016 = vmatprep.subr.mxu0 %v438
    %1017 = vmatpush1.msra.mxu0 %v437
    %1018 = vmatprep.subr.mxu0 %v442
    %1019 = vmatpush1.msra.mxu0 %v441
    %1020 = vmatprep.subr.mxu0 %v446
    %1021 = vmatpush1.msra.mxu0 %v445
    %1022 = vmatprep.subr.mxu0 %v450
    %1023 = vmatpush1.msra.mxu0 %v449
    %1024 = vmatprep.subr.mxu0 %v454
    %1025 = vmatpush1.msra.mxu0 %v453
    %1026 = vmatprep.subr.mxu0 %v458
    %1027 = vmatpush1.msra.mxu0 %v457
    %1028 = vmatprep.subr.mxu0 %v462
    %1029 = vmatpush1.msra.mxu0 %v461
    %1030 = vmatprep.subr.mxu0 %v466
    %1031 = vmatpush1.msra.mxu0 %v465
    %1032 = vmatprep.subr.mxu0 %v470
    %1033 = vmatpush1.msra.mxu0 %v469
    %1034 = vmatprep.subr.mxu0 %v474
    %1035 = vmatpush1.msra.mxu0 %v473
    %1036 = vmatprep.subr.mxu0 %v478
    %1037 = vmatpush1.msra.mxu0 %v477
    %1038 = vmatprep.subr.mxu0 0.0
    %1039 = vmatpush1.msra.mxu0 0.0
    %1040 = vmatprep.subr.mxu0 0.0
    %1041 = vmatpush1.msra.mxu0 0.0
    %1042 = vmatprep.subr.mxu0 0.0
    %1043 = vmatpush1.msra.mxu0 0.0
    %1044 = vmatprep.subr.mxu0 0.0
    %1045 = vmatpush1.msra.mxu0 0.0
    %1046 = vmatprep.subr.mxu0 0.0
    %1047 = vmatpush1.msra.mxu0 0.0
    %1048 = vmatprep.subr.mxu0 0.0
    %1049 = vmatpush1.msra.mxu0 0.0
    %1050 = vmatprep.subr.mxu0 0.0
    %1051 = vmatpush1.msra.mxu0 0.0
    %1052 = vmatprep.subr.mxu0 0.0
    %1053 = vmatpush1.msra.mxu0 0.0
    %1054 = vmatprep.subr.mxu0 0.0
    %1055 = vmatpush1.msra.mxu0 0.0
    %1056 = vmatprep.subr.mxu0 0.0
    %1057 = vmatpush1.msra.mxu0 0.0
    %1058 = vmatprep.subr.mxu0 0.0
    %1059 = vmatpush1.msra.mxu0 0.0
    %1060 = vmatprep.subr.mxu0 0.0
    %1061 = vmatpush1.msra.mxu0 0.0
    %1062 = vmatprep.subr.mxu0 0.0
    %1063 = vmatpush1.msra.mxu0 0.0
    %1064 = vmatprep.subr.mxu0 0.0
    %1065 = vmatpush1.msra.mxu0 0.0
    %1066 = vmatprep.subr.mxu0 0.0
    %1067 = vmatpush1.msra.mxu0 0.0
    %1068 = vmatprep.subr.mxu0 0.0
    %1069 = vmatpush1.msra.mxu0 0.0
    %1070 = vmatprep.mubr.f32.mxu0 0.0
    %1071 = vmatmul.mubr.f32.gmra.mrb[0].mxu0 %v1000
    %v1072 = vpop.f32.mrb[0].mxu0
    %v1073 = vadd.f32 0.0, %v1072
    %v1074 = vpop.f32.mrb[0].mxu0
    %v1075 = vadd.f32 0.0, %v1074
    %1076 = vdwg.mxu0
    %1077 = vmatprep.subr.mxu0 %v420
    %1078 = vmatpush1.msra.mxu0 %v419
    %1079 = vmatprep.subr.mxu0 %v424
    %1080 = vmatpush1.msra.mxu0 %v423
    %1081 = vmatprep.subr.mxu0 %v428
    %1082 = vmatpush1.msra.mxu0 %v427
    %1083 = vmatprep.subr.mxu0 %v432
    %1084 = vmatpush1.msra.mxu0 %v431
    %1085 = vmatprep.subr.mxu0 %v436
    %1086 = vmatpush1.msra.mxu0 %v435
    %1087 = vmatprep.subr.mxu0 %v440
    %1088 = vmatpush1.msra.mxu0 %v439
    %1089 = vmatprep.subr.mxu0 %v444
    %1090 = vmatpush1.msra.mxu0 %v443
    %1091 = vmatprep.subr.mxu0 %v448
    %1092 = vmatpush1.msra.mxu0 %v447
    %1093 = vmatprep.subr.mxu0 %v452
    %1094 = vmatpush1.msra.mxu0 %v451
    %1095 = vmatprep.subr.mxu0 %v456
    %1096 = vmatpush1.msra.mxu0 %v455
    %1097 = vmatprep.subr.mxu0 %v460
    %1098 = vmatpush1.msra.mxu0 %v459
    %1099 = vmatprep.subr.mxu0 %v464
    %1100 = vmatpush1.msra.mxu0 %v463
    %1101 = vmatprep.subr.mxu0 %v468
    %1102 = vmatpush1.msra.mxu0 %v467
    %1103 = vmatprep.subr.mxu0 %v472
    %1104 = vmatpush1.msra.mxu0 %v471
    %1105 = vmatprep.subr.mxu0 %v476
    %1106 = vmatpush1.msra.mxu0 %v475
    %1107 = vmatprep.subr.mxu0 %v480
    %1108 = vmatpush1.msra.mxu0 %v479
    %1109 = vmatprep.subr.mxu0 0.0
    %1110 = vmatpush1.msra.mxu0 0.0
    %1111 = vmatprep.subr.mxu0 0.0
    %1112 = vmatpush1.msra.mxu0 0.0
    %1113 = vmatprep.subr.mxu0 0.0
    %1114 = vmatpush1.msra.mxu0 0.0
    %1115 = vmatprep.subr.mxu0 0.0
    %1116 = vmatpush1.msra.mxu0 0.0
    %1117 = vmatprep.subr.mxu0 0.0
    %1118 = vmatpush1.msra.mxu0 0.0
    %1119 = vmatprep.subr.mxu0 0.0
    %1120 = vmatpush1.msra.mxu0 0.0
    %1121 = vmatprep.subr.mxu0 0.0
    %1122 = vmatpush1.msra.mxu0 0.0
    %1123 = vmatprep.subr.mxu0 0.0
    %1124 = vmatpush1.msra.mxu0 0.0
    %1125 = vmatprep.subr.mxu0 0.0
    %1126 = vmatpush1.msra.mxu0 0.0
    %1127 = vmatprep.subr.mxu0 0.0
    %1128 = vmatpush1.msra.mxu0 0.0
    %1129 = vmatprep.subr.mxu0 0.0
    %1130 = vmatpush1.msra.mxu0 0.0
    %1131 = vmatprep.subr.mxu0 0.0
    %1132 = vmatpush1.msra.mxu0 0.0
    %1133 = vmatprep.subr.mxu0 0.0
    %1134 = vmatpush1.msra.mxu0 0.0
    %1135 = vmatprep.subr.mxu0 0.0
    %1136 = vmatpush1.msra.mxu0 0.0
    %1137 = vmatprep.subr.mxu0 0.0
    %1138 = vmatpush1.msra.mxu0 0.0
    %1139 = vmatprep.subr.mxu0 0.0
    %1140 = vmatpush1.msra.mxu0 0.0
    %1141 = vmatprep.mubr.f32.mxu0 0.0
    %1142 = vmatmul.mubr.f32.gmra.mrb[0].mxu0 %v1000
    %v1143 = vpop.f32.mrb[0].mxu0
    %v1144 = vadd.f32 0.0, %v1143
    %v1145 = vpop.f32.mrb[0].mxu0
    %v1146 = vadd.f32 0.0, %v1145
    %1147 = vdwg.mxu0
    %v1148 = vadd.f32 %v1002, %v1073
    %v1149 = vadd.f32 %v1003, %v1075
    %v1150 = vadd.f32 %v1004, %v1144
    %v1151 = vadd.f32 %v1005, %v1146
    %v1152 = vxor.u32 %v1148, 2147483648
    %v1153 = vxor.u32 %v1149, 2147483648
    %v1154 = vxor.u32 %v1150, 2147483648
    %v1155 = vmul.f32 %v1152, 1.442695
    %v1156 = vpow.pop %v1155
    %v1157 = vmul.f32 %v1153, 1.442695
    %v1158 = vpow.pop %v1157
    %v1159 = vmul.f32 %v1154, 1.442695
    %v1160 = vpow.pop %v1159
    %v1161 = vadd.f32 %v1156, 1.0
    %v1162 = vadd.f32 %v1158, 1.0
    %v1163 = vadd.f32 %v1160, 1.0
    %v1164 = vrcp.pop %v1161
    %v1165 = vmul.f32 1.0, %v1164
    %v1166 = vrcp.pop %v1162
    %v1167 = vmul.f32 1.0, %v1166
    %v1168 = vrcp.pop %v1163
    %v1169 = vmul.f32 1.0, %v1168
    %v1170 = vtanh.pop %v1151
    %v1171 = vmul.f32 %v1167, %v998
    %v1172 = vmul.f32 %v1165, %v1170
    %v1173 = vadd.f32 %v1171, %v1172
    %v1174 = vtanh.pop %v1173
    %v1175 = vmul.f32 %v1169, %v1174
    %s1176 = scalar_lea.vmem [#allocation2], 128
    %v1177 = vld [vmem:[%s1176] sm:$0xff]
    %v1178 = vld [vmem:[%s1176 + $0x8] sm:$0xff]
    %v1179 = vld [vmem:[%s1176 + $0x10] sm:$0xff]
    %v1180 = vld [vmem:[%s1176 + $0x18] sm:$0xff]
    %1181 = vmatprep.subr.mxu0 %v418
    %1182 = vmatpush1.msra.mxu0 %v417
    %1183 = vmatprep.subr.mxu0 %v422
    %1184 = vmatpush1.msra.mxu0 %v421
    %1185 = vmatprep.subr.mxu0 %v426
    %1186 = vmatpush1.msra.mxu0 %v425
    %1187 = vmatprep.subr.mxu0 %v430
    %1188 = vmatpush1.msra.mxu0 %v429
    %1189 = vmatprep.subr.mxu0 %v434
    %1190 = vmatpush1.msra.mxu0 %v433
    %1191 = vmatprep.subr.mxu0 %v438
    %1192 = vmatpush1.msra.mxu0 %v437
    %1193 = vmatprep.subr.mxu0 %v442
    %1194 = vmatpush1.msra.mxu0 %v441
    %1195 = vmatprep.subr.mxu0 %v446
    %1196 = vmatpush1.msra.mxu0 %v445
    %1197 = vmatprep.subr.mxu0 %v450
    %1198 = vmatpush1.msra.mxu0 %v449
    %1199 = vmatprep.subr.mxu0 %v454
    %1200 = vmatpush1.msra.mxu0 %v453
    %1201 = vmatprep.subr.mxu0 %v458
    %1202 = vmatpush1.msra.mxu0 %v457
    %1203 = vmatprep.subr.mxu0 %v462
    %1204 = vmatpush1.msra.mxu0 %v461
    %1205 = vmatprep.subr.mxu0 %v466
    %1206 = vmatpush1.msra.mxu0 %v465
    %1207 = vmatprep.subr.mxu0 %v470
    %1208 = vmatpush1.msra.mxu0 %v469
    %1209 = vmatprep.subr.mxu0 %v474
    %1210 = vmatpush1.msra.mxu0 %v473
    %1211 = vmatprep.subr.mxu0 %v478
    %1212 = vmatpush1.msra.mxu0 %v477
    %1213 = vmatprep.subr.mxu0 0.0
    %1214 = vmatpush1.msra.mxu0 0.0
    %1215 = vmatprep.subr.mxu0 0.0
    %1216 = vmatpush1.msra.mxu0 0.0
    %1217 = vmatprep.subr.mxu0 0.0
    %1218 = vmatpush1.msra.mxu0 0.0
    %1219 = vmatprep.subr.mxu0 0.0
    %1220 = vmatpush1.msra.mxu0 0.0
    %1221 = vmatprep.subr.mxu0 0.0
    %1222 = vmatpush1.msra.mxu0 0.0
    %1223 = vmatprep.subr.mxu0 0.0
    %1224 = vmatpush1.msra.mxu0 0.0
    %1225 = vmatprep.subr.mxu0 0.0
    %1226 = vmatpush1.msra.mxu0 0.0
    %1227 = vmatprep.subr.mxu0 0.0
    %1228 = vmatpush1.msra.mxu0 0.0
    %1229 = vmatprep.subr.mxu0 0.0
    %1230 = vmatpush1.msra.mxu0 0.0
    %1231 = vmatprep.subr.mxu0 0.0
    %1232 = vmatpush1.msra.mxu0 0.0
    %1233 = vmatprep.subr.mxu0 0.0
    %1234 = vmatpush1.msra.mxu0 0.0
    %1235 = vmatprep.subr.mxu0 0.0
    %1236 = vmatpush1.msra.mxu0 0.0
    %1237 = vmatprep.subr.mxu0 0.0
    %1238 = vmatpush1.msra.mxu0 0.0
    %1239 = vmatprep.subr.mxu0 0.0
    %1240 = vmatpush1.msra.mxu0 0.0
    %1241 = vmatprep.subr.mxu0 0.0
    %1242 = vmatpush1.msra.mxu0 0.0
    %1243 = vmatprep.subr.mxu0 0.0
    %1244 = vmatpush1.msra.mxu0 0.0
    %1245 = vmatprep.mubr.f32.mxu0 0.0
    %1246 = vmatmul.mubr.f32.gmra.mrb[0].mxu0 %v1175
    %v1247 = vpop.f32.mrb[0].mxu0
    %v1248 = vadd.f32 0.0, %v1247
    %v1249 = vpop.f32.mrb[0].mxu0
    %v1250 = vadd.f32 0.0, %v1249
    %1251 = vdwg.mxu0
    %1252 = vmatprep.subr.mxu0 %v420
    %1253 = vmatpush1.msra.mxu0 %v419
    %1254 = vmatprep.subr.mxu0 %v424
    %1255 = vmatpush1.msra.mxu0 %v423
    %1256 = vmatprep.subr.mxu0 %v428
    %1257 = vmatpush1.msra.mxu0 %v427
    %1258 = vmatprep.subr.mxu0 %v432
    %1259 = vmatpush1.msra.mxu0 %v431
    %1260 = vmatprep.subr.mxu0 %v436
    %1261 = vmatpush1.msra.mxu0 %v435
    %1262 = vmatprep.subr.mxu0 %v440
    %1263 = vmatpush1.msra.mxu0 %v439
    %1264 = vmatprep.subr.mxu0 %v444
    %1265 = vmatpush1.msra.mxu0 %v443
    %1266 = vmatprep.subr.mxu0 %v448
    %1267 = vmatpush1.msra.mxu0 %v447
    %1268 = vmatprep.subr.mxu0 %v452
    %1269 = vmatpush1.msra.mxu0 %v451
    %1270 = vmatprep.subr.mxu0 %v456
    %1271 = vmatpush1.msra.mxu0 %v455
    %1272 = vmatprep.subr.mxu0 %v460
    %1273 = vmatpush1.msra.mxu0 %v459
    %1274 = vmatprep.subr.mxu0 %v464
    %1275 = vmatpush1.msra.mxu0 %v463
    %1276 = vmatprep.subr.mxu0 %v468
    %1277 = vmatpush1.msra.mxu0 %v467
    %1278 = vmatprep.subr.mxu0 %v472
    %1279 = vmatpush1.msra.mxu0 %v471
    %1280 = vmatprep.subr.mxu0 %v476
    %1281 = vmatpush1.msra.mxu0 %v475
    %1282 = vmatprep.subr.mxu0 %v480
    %1283 = vmatpush1.msra.mxu0 %v479
    %1284 = vmatprep.subr.mxu0 0.0
    %1285 = vmatpush1.msra.mxu0 0.0
    %1286 = vmatprep.subr.mxu0 0.0
    %1287 = vmatpush1.msra.mxu0 0.0
    %1288 = vmatprep.subr.mxu0 0.0
    %1289 = vmatpush1.msra.mxu0 0.0
    %1290 = vmatprep.subr.mxu0 0.0
    %1291 = vmatpush1.msra.mxu0 0.0
    %1292 = vmatprep.subr.mxu0 0.0
    %1293 = vmatpush1.msra.mxu0 0.0
    %1294 = vmatprep.subr.mxu0 0.0
    %1295 = vmatpush1.msra.mxu0 0.0
    %1296 = vmatprep.subr.mxu0 0.0
    %1297 = vmatpush1.msra.mxu0 0.0
    %1298 = vmatprep.subr.mxu0 0.0
    %1299 = vmatpush1.msra.mxu0 0.0
    %1300 = vmatprep.subr.mxu0 0.0
    %1301 = vmatpush1.msra.mxu0 0.0
    %1302 = vmatprep.subr.mxu0 0.0
    %1303 = vmatpush1.msra.mxu0 0.0
    %1304 = vmatprep.subr.mxu0 0.0
    %1305 = vmatpush1.msra.mxu0 0.0
    %1306 = vmatprep.subr.mxu0 0.0
    %1307 = vmatpush1.msra.mxu0 0.0
    %1308 = vmatprep.subr.mxu0 0.0
    %1309 = vmatpush1.msra.mxu0 0.0
    %1310 = vmatprep.subr.mxu0 0.0
    %1311 = vmatpush1.msra.mxu0 0.0
    %1312 = vmatprep.subr.mxu0 0.0
    %1313 = vmatpush1.msra.mxu0 0.0
    %1314 = vmatprep.subr.mxu0 0.0
    %1315 = vmatpush1.msra.mxu0 0.0
    %1316 = vmatprep.mubr.f32.mxu0 0.0
    %1317 = vmatmul.mubr.f32.gmra.mrb[0].mxu0 %v1175
    %v1318 = vpop.f32.mrb[0].mxu0
    %v1319 = vadd.f32 0.0, %v1318
    %v1320 = vpop.f32.mrb[0].mxu0
    %v1321 = vadd.f32 0.0, %v1320
    %1322 = vdwg.mxu0
    %v1323 = vadd.f32 %v1177, %v1248
    %v1324 = vadd.f32 %v1178, %v1250
    %v1325 = vadd.f32 %v1179, %v1319
    %v1326 = vadd.f32 %v1180, %v1321
    %v1327 = vxor.u32 %v1323, 2147483648
    %v1328 = vxor.u32 %v1324, 2147483648
    %v1329 = vxor.u32 %v1325, 2147483648
    %v1330 = vmul.f32 %v1327, 1.442695
    %v1331 = vpow.pop %v1330
    %v1332 = vmul.f32 %v1328, 1.442695
    %v1333 = vpow.pop %v1332
    %v1334 = vmul.f32 %v1329, 1.442695
    %v1335 = vpow.pop %v1334
    %v1336 = vadd.f32 %v1331, 1.0
    %v1337 = vadd.f32 %v1333, 1.0
    %v1338 = vadd.f32 %v1335, 1.0
    %v1339 = vrcp.pop %v1336
    %v1340 = vmul.f32 1.0, %v1339
    %v1341 = vrcp.pop %v1337
    %v1342 = vmul.f32 1.0, %v1341
    %v1343 = vrcp.pop %v1338
    %v1344 = vmul.f32 1.0, %v1343
    %v1345 = vtanh.pop %v1326
    %v1346 = vmul.f32 %v1342, %v1173
    %v1347 = vmul.f32 %v1340, %v1345
    %v1348 = vadd.f32 %v1346, %v1347
    %v1349 = vtanh.pop %v1348
    %v1350 = vmul.f32 %v1344, %v1349
    %s1351 = scalar_lea.vmem [#allocation2], 160
    %v1352 = vld [vmem:[%s1351] sm:$0xff]
    %v1353 = vld [vmem:[%s1351 + $0x8] sm:$0xff]
    %v1354 = vld [vmem:[%s1351 + $0x10] sm:$0xff]
    %v1355 = vld [vmem:[%s1351 + $0x18] sm:$0xff]
    %1356 = vmatprep.subr.mxu0 %v418
    %1357 = vmatpush1.msra.mxu0 %v417
    %1358 = vmatprep.subr.mxu0 %v422
    %1359 = vmatpush1.msra.mxu0 %v421
    %1360 = vmatprep.subr.mxu0 %v426
    %1361 = vmatpush1.msra.mxu0 %v425
    %1362 = vmatprep.subr.mxu0 %v430
    %1363 = vmatpush1.msra.mxu0 %v429
    %1364 = vmatprep.subr.mxu0 %v434
    %1365 = vmatpush1.msra.mxu0 %v433
    %1366 = vmatprep.subr.mxu0 %v438
    %1367 = vmatpush1.msra.mxu0 %v437
    %1368 = vmatprep.subr.mxu0 %v442
    %1369 = vmatpush1.msra.mxu0 %v441
    %1370 = vmatprep.subr.mxu0 %v446
    %1371 = vmatpush1.msra.mxu0 %v445
    %1372 = vmatprep.subr.mxu0 %v450
    %1373 = vmatpush1.msra.mxu0 %v449
    %1374 = vmatprep.subr.mxu0 %v454
    %1375 = vmatpush1.msra.mxu0 %v453
    %1376 = vmatprep.subr.mxu0 %v458
    %1377 = vmatpush1.msra.mxu0 %v457
    %1378 = vmatprep.subr.mxu0 %v462
    %1379 = vmatpush1.msra.mxu0 %v461
    %1380 = vmatprep.subr.mxu0 %v466
    %1381 = vmatpush1.msra.mxu0 %v465
    %1382 = vmatprep.subr.mxu0 %v470
    %1383 = vmatpush1.msra.mxu0 %v469
    %1384 = vmatprep.subr.mxu0 %v474
    %1385 = vmatpush1.msra.mxu0 %v473
    %1386 = vmatprep.subr.mxu0 %v478
    %1387 = vmatpush1.msra.mxu0 %v477
    %1388 = vmatprep.subr.mxu0 0.0
    %1389 = vmatpush1.msra.mxu0 0.0
    %1390 = vmatprep.subr.mxu0 0.0
    %1391 = vmatpush1.msra.mxu0 0.0
    %1392 = vmatprep.subr.mxu0 0.0
    %1393 = vmatpush1.msra.mxu0 0.0
    %1394 = vmatprep.subr.mxu0 0.0
    %1395 = vmatpush1.msra.mxu0 0.0
    %1396 = vmatprep.subr.mxu0 0.0
    %1397 = vmatpush1.msra.mxu0 0.0
    %1398 = vmatprep.subr.mxu0 0.0
    %1399 = vmatpush1.msra.mxu0 0.0
    %1400 = vmatprep.subr.mxu0 0.0
    %1401 = vmatpush1.msra.mxu0 0.0
    %1402 = vmatprep.subr.mxu0 0.0
    %1403 = vmatpush1.msra.mxu0 0.0
    %1404 = vmatprep.subr.mxu0 0.0
    %1405 = vmatpush1.msra.mxu0 0.0
    %1406 = vmatprep.subr.mxu0 0.0
    %1407 = vmatpush1.msra.mxu0 0.0
    %1408 = vmatprep.subr.mxu0 0.0
    %1409 = vmatpush1.msra.mxu0 0.0
    %1410 = vmatprep.subr.mxu0 0.0
    %1411 = vmatpush1.msra.mxu0 0.0
    %1412 = vmatprep.subr.mxu0 0.0
    %1413 = vmatpush1.msra.mxu0 0.0
    %1414 = vmatprep.subr.mxu0 0.0
    %1415 = vmatpush1.msra.mxu0 0.0
    %1416 = vmatprep.subr.mxu0 0.0
    %1417 = vmatpush1.msra.mxu0 0.0
    %1418 = vmatprep.subr.mxu0 0.0
    %1419 = vmatpush1.msra.mxu0 0.0
    %1420 = vmatprep.mubr.f32.mxu0 0.0
    %1421 = vmatmul.mubr.f32.gmra.mrb[0].mxu0 %v1350
    %v1422 = vpop.f32.mrb[0].mxu0
    %v1423 = vadd.f32 0.0, %v1422
    %v1424 = vpop.f32.mrb[0].mxu0
    %v1425 = vadd.f32 0.0, %v1424
    %1426 = vdwg.mxu0
    %1427 = vmatprep.subr.mxu0 %v420
    %1428 = vmatpush1.msra.mxu0 %v419
    %1429 = vmatprep.subr.mxu0 %v424
    %1430 = vmatpush1.msra.mxu0 %v423
    %1431 = vmatprep.subr.mxu0 %v428
    %1432 = vmatpush1.msra.mxu0 %v427
    %1433 = vmatprep.subr.mxu0 %v432
    %1434 = vmatpush1.msra.mxu0 %v431
    %1435 = vmatprep.subr.mxu0 %v436
    %1436 = vmatpush1.msra.mxu0 %v435
    %1437 = vmatprep.subr.mxu0 %v440
    %1438 = vmatpush1.msra.mxu0 %v439
    %1439 = vmatprep.subr.mxu0 %v444
    %1440 = vmatpush1.msra.mxu0 %v443
    %1441 = vmatprep.subr.mxu0 %v448
    %1442 = vmatpush1.msra.mxu0 %v447
    %1443 = vmatprep.subr.mxu0 %v452
    %1444 = vmatpush1.msra.mxu0 %v451
    %1445 = vmatprep.subr.mxu0 %v456
    %1446 = vmatpush1.msra.mxu0 %v455
    %1447 = vmatprep.subr.mxu0 %v460
    %1448 = vmatpush1.msra.mxu0 %v459
    %1449 = vmatprep.subr.mxu0 %v464
    %1450 = vmatpush1.msra.mxu0 %v463
    %1451 = vmatprep.subr.mxu0 %v468
    %1452 = vmatpush1.msra.mxu0 %v467
    %1453 = vmatprep.subr.mxu0 %v472
    %1454 = vmatpush1.msra.mxu0 %v471
    %1455 = vmatprep.subr.mxu0 %v476
    %1456 = vmatpush1.msra.mxu0 %v475
    %1457 = vmatprep.subr.mxu0 %v480
    %1458 = vmatpush1.msra.mxu0 %v479
    %1459 = vmatprep.subr.mxu0 0.0
    %1460 = vmatpush1.msra.mxu0 0.0
    %1461 = vmatprep.subr.mxu0 0.0
    %1462 = vmatpush1.msra.mxu0 0.0
    %1463 = vmatprep.subr.mxu0 0.0
    %1464 = vmatpush1.msra.mxu0 0.0
    %1465 = vmatprep.subr.mxu0 0.0
    %1466 = vmatpush1.msra.mxu0 0.0
    %1467 = vmatprep.subr.mxu0 0.0
    %1468 = vmatpush1.msra.mxu0 0.0
    %1469 = vmatprep.subr.mxu0 0.0
    %1470 = vmatpush1.msra.mxu0 0.0
    %1471 = vmatprep.subr.mxu0 0.0
    %1472 = vmatpush1.msra.mxu0 0.0
    %1473 = vmatprep.subr.mxu0 0.0
    %1474 = vmatpush1.msra.mxu0 0.0
    %1475 = vmatprep.subr.mxu0 0.0
    %1476 = vmatpush1.msra.mxu0 0.0
    %1477 = vmatprep.subr.mxu0 0.0
    %1478 = vmatpush1.msra.mxu0 0.0
    %1479 = vmatprep.subr.mxu0 0.0
    %1480 = vmatpush1.msra.mxu0 0.0
    %1481 = vmatprep.subr.mxu0 0.0
    %1482 = vmatpush1.msra.mxu0 0.0
    %1483 = vmatprep.subr.mxu0 0.0
    %1484 = vmatpush1.msra.mxu0 0.0
    %1485 = vmatprep.subr.mxu0 0.0
    %1486 = vmatpush1.msra.mxu0 0.0
    %1487 = vmatprep.subr.mxu0 0.0
    %1488 = vmatpush1.msra.mxu0 0.0
    %1489 = vmatprep.subr.mxu0 0.0
    %1490 = vmatpush1.msra.mxu0 0.0
    %1491 = vmatprep.mubr.f32.mxu0 0.0
    %1492 = vmatmul.mubr.f32.gmra.mrb[0].mxu0 %v1350
    %v1493 = vpop.f32.mrb[0].mxu0
    %v1494 = vadd.f32 0.0, %v1493
    %v1495 = vpop.f32.mrb[0].mxu0
    %v1496 = vadd.f32 0.0, %v1495
    %1497 = vdwg.mxu0
    %v1498 = vadd.f32 %v1352, %v1423
    %v1499 = vadd.f32 %v1353, %v1425
    %v1500 = vadd.f32 %v1354, %v1494
    %v1501 = vadd.f32 %v1355, %v1496
    %v1502 = vxor.u32 %v1498, 2147483648
    %v1503 = vxor.u32 %v1499, 2147483648
    %v1504 = vxor.u32 %v1500, 2147483648
    %v1505 = vmul.f32 %v1502, 1.442695
    %v1506 = vpow.pop %v1505
    %v1507 = vmul.f32 %v1503, 1.442695
    %v1508 = vpow.pop %v1507
    %v1509 = vmul.f32 %v1504, 1.442695
    %v1510 = vpow.pop %v1509
    %v1511 = vadd.f32 %v1506, 1.0
    %v1512 = vadd.f32 %v1508, 1.0
    %v1513 = vadd.f32 %v1510, 1.0
    %v1514 = vrcp.pop %v1511
    %v1515 = vmul.f32 1.0, %v1514
    %v1516 = vrcp.pop %v1512
    %v1517 = vmul.f32 1.0, %v1516
    %v1518 = vrcp.pop %v1513
    %v1519 = vmul.f32 1.0, %v1518
    %v1520 = vtanh.pop %v1501
    %v1521 = vmul.f32 %v1517, %v1348
    %v1522 = vmul.f32 %v1515, %v1520
    %v1523 = vadd.f32 %v1521, %v1522
    %v1524 = vtanh.pop %v1523
    %v1525 = vmul.f32 %v1519, %v1524
    %s1526 = scalar_lea.vmem [#allocation2], 192
    %v1527 = vld [vmem:[%s1526] sm:$0xff]
    %v1528 = vld [vmem:[%s1526 + $0x8] sm:$0xff]
    %v1529 = vld [vmem:[%s1526 + $0x10] sm:$0xff]
    %v1530 = vld [vmem:[%s1526 + $0x18] sm:$0xff]
    %1531 = vmatprep.subr.mxu0 %v418
    %1532 = vmatpush1.msra.mxu0 %v417
    %1533 = vmatprep.subr.mxu0 %v422
    %1534 = vmatpush1.msra.mxu0 %v421
    %1535 = vmatprep.subr.mxu0 %v426
    %1536 = vmatpush1.msra.mxu0 %v425
    %1537 = vmatprep.subr.mxu0 %v430
    %1538 = vmatpush1.msra.mxu0 %v429
    %1539 = vmatprep.subr.mxu0 %v434
    %1540 = vmatpush1.msra.mxu0 %v433
    %1541 = vmatprep.subr.mxu0 %v438
    %1542 = vmatpush1.msra.mxu0 %v437
    %1543 = vmatprep.subr.mxu0 %v442
    %1544 = vmatpush1.msra.mxu0 %v441
    %1545 = vmatprep.subr.mxu0 %v446
    %1546 = vmatpush1.msra.mxu0 %v445
    %1547 = vmatprep.subr.mxu0 %v450
    %1548 = vmatpush1.msra.mxu0 %v449
    %1549 = vmatprep.subr.mxu0 %v454
    %1550 = vmatpush1.msra.mxu0 %v453
    %1551 = vmatprep.subr.mxu0 %v458
    %1552 = vmatpush1.msra.mxu0 %v457
    %1553 = vmatprep.subr.mxu0 %v462
    %1554 = vmatpush1.msra.mxu0 %v461
    %1555 = vmatprep.subr.mxu0 %v466
    %1556 = vmatpush1.msra.mxu0 %v465
    %1557 = vmatprep.subr.mxu0 %v470
    %1558 = vmatpush1.msra.mxu0 %v469
    %1559 = vmatprep.subr.mxu0 %v474
    %1560 = vmatpush1.msra.mxu0 %v473
    %1561 = vmatprep.subr.mxu0 %v478
    %1562 = vmatpush1.msra.mxu0 %v477
    %1563 = vmatprep.subr.mxu0 0.0
    %1564 = vmatpush1.msra.mxu0 0.0
    %1565 = vmatprep.subr.mxu0 0.0
    %1566 = vmatpush1.msra.mxu0 0.0
    %1567 = vmatprep.subr.mxu0 0.0
    %1568 = vmatpush1.msra.mxu0 0.0
    %1569 = vmatprep.subr.mxu0 0.0
    %1570 = vmatpush1.msra.mxu0 0.0
    %1571 = vmatprep.subr.mxu0 0.0
    %1572 = vmatpush1.msra.mxu0 0.0
    %1573 = vmatprep.subr.mxu0 0.0
    %1574 = vmatpush1.msra.mxu0 0.0
    %1575 = vmatprep.subr.mxu0 0.0
    %1576 = vmatpush1.msra.mxu0 0.0
    %1577 = vmatprep.subr.mxu0 0.0
    %1578 = vmatpush1.msra.mxu0 0.0
    %1579 = vmatprep.subr.mxu0 0.0
    %1580 = vmatpush1.msra.mxu0 0.0
    %1581 = vmatprep.subr.mxu0 0.0
    %1582 = vmatpush1.msra.mxu0 0.0
    %1583 = vmatprep.subr.mxu0 0.0
    %1584 = vmatpush1.msra.mxu0 0.0
    %1585 = vmatprep.subr.mxu0 0.0
    %1586 = vmatpush1.msra.mxu0 0.0
    %1587 = vmatprep.subr.mxu0 0.0
    %1588 = vmatpush1.msra.mxu0 0.0
    %1589 = vmatprep.subr.mxu0 0.0
    %1590 = vmatpush1.msra.mxu0 0.0
    %1591 = vmatprep.subr.mxu0 0.0
    %1592 = vmatpush1.msra.mxu0 0.0
    %1593 = vmatprep.subr.mxu0 0.0
    %1594 = vmatpush1.msra.mxu0 0.0
    %1595 = vmatprep.mubr.f32.mxu0 0.0
    %1596 = vmatmul.mubr.f32.gmra.mrb[0].mxu0 %v1525
    %v1597 = vpop.f32.mrb[0].mxu0
    %v1598 = vadd.f32 0.0, %v1597
    %v1599 = vpop.f32.mrb[0].mxu0
    %v1600 = vadd.f32 0.0, %v1599
    %1601 = vdwg.mxu0
    %1602 = vmatprep.subr.mxu0 %v420
    %1603 = vmatpush1.msra.mxu0 %v419
    %1604 = vmatprep.subr.mxu0 %v424
    %1605 = vmatpush1.msra.mxu0 %v423
    %1606 = vmatprep.subr.mxu0 %v428
    %1607 = vmatpush1.msra.mxu0 %v427
    %1608 = vmatprep.subr.mxu0 %v432
    %1609 = vmatpush1.msra.mxu0 %v431
    %1610 = vmatprep.subr.mxu0 %v436
    %1611 = vmatpush1.msra.mxu0 %v435
    %1612 = vmatprep.subr.mxu0 %v440
    %1613 = vmatpush1.msra.mxu0 %v439
    %1614 = vmatprep.subr.mxu0 %v444
    %1615 = vmatpush1.msra.mxu0 %v443
    %1616 = vmatprep.subr.mxu0 %v448
    %1617 = vmatpush1.msra.mxu0 %v447
    %1618 = vmatprep.subr.mxu0 %v452
    %1619 = vmatpush1.msra.mxu0 %v451
    %1620 = vmatprep.subr.mxu0 %v456
    %1621 = vmatpush1.msra.mxu0 %v455
    %1622 = vmatprep.subr.mxu0 %v460
    %1623 = vmatpush1.msra.mxu0 %v459
    %1624 = vmatprep.subr.mxu0 %v464
    %1625 = vmatpush1.msra.mxu0 %v463
    %1626 = vmatprep.subr.mxu0 %v468
    %1627 = vmatpush1.msra.mxu0 %v467
    %1628 = vmatprep.subr.mxu0 %v472
    %1629 = vmatpush1.msra.mxu0 %v471
    %1630 = vmatprep.subr.mxu0 %v476
    %1631 = vmatpush1.msra.mxu0 %v475
    %1632 = vmatprep.subr.mxu0 %v480
    %1633 = vmatpush1.msra.mxu0 %v479
    %1634 = vmatprep.subr.mxu0 0.0
    %1635 = vmatpush1.msra.mxu0 0.0
    %1636 = vmatprep.subr.mxu0 0.0
    %1637 = vmatpush1.msra.mxu0 0.0
    %1638 = vmatprep.subr.mxu0 0.0
    %1639 = vmatpush1.msra.mxu0 0.0
    %1640 = vmatprep.subr.mxu0 0.0
    %1641 = vmatpush1.msra.mxu0 0.0
    %1642 = vmatprep.subr.mxu0 0.0
    %1643 = vmatpush1.msra.mxu0 0.0
    %1644 = vmatprep.subr.mxu0 0.0
    %1645 = vmatpush1.msra.mxu0 0.0
    %1646 = vmatprep.subr.mxu0 0.0
    %1647 = vmatpush1.msra.mxu0 0.0
    %1648 = vmatprep.subr.mxu0 0.0
    %1649 = vmatpush1.msra.mxu0 0.0
    %1650 = vmatprep.subr.mxu0 0.0
    %1651 = vmatpush1.msra.mxu0 0.0
    %1652 = vmatprep.subr.mxu0 0.0
    %1653 = vmatpush1.msra.mxu0 0.0
    %1654 = vmatprep.subr.mxu0 0.0
    %1655 = vmatpush1.msra.mxu0 0.0
    %1656 = vmatprep.subr.mxu0 0.0
    %1657 = vmatpush1.msra.mxu0 0.0
    %1658 = vmatprep.subr.mxu0 0.0
    %1659 = vmatpush1.msra.mxu0 0.0
    %1660 = vmatprep.subr.mxu0 0.0
    %1661 = vmatpush1.msra.mxu0 0.0
    %1662 = vmatprep.subr.mxu0 0.0
    %1663 = vmatpush1.msra.mxu0 0.0
    %1664 = vmatprep.subr.mxu0 0.0
    %1665 = vmatpush1.msra.mxu0 0.0
    %1666 = vmatprep.mubr.f32.mxu0 0.0
    %1667 = vmatmul.mubr.f32.gmra.mrb[0].mxu0 %v1525
    %v1668 = vpop.f32.mrb[0].mxu0
    %v1669 = vadd.f32 0.0, %v1668
    %v1670 = vpop.f32.mrb[0].mxu0
    %v1671 = vadd.f32 0.0, %v1670
    %1672 = vdwg.mxu0
    %v1673 = vadd.f32 %v1527, %v1598
    %v1674 = vadd.f32 %v1528, %v1600
    %v1675 = vadd.f32 %v1529, %v1669
    %v1676 = vadd.f32 %v1530, %v1671
    %v1677 = vxor.u32 %v1673, 2147483648
    %v1678 = vxor.u32 %v1674, 2147483648
    %v1679 = vxor.u32 %v1675, 2147483648
    %v1680 = vmul.f32 %v1677, 1.442695
    %v1681 = vpow.pop %v1680
    %v1682 = vmul.f32 %v1678, 1.442695
    %v1683 = vpow.pop %v1682
    %v1684 = vmul.f32 %v1679, 1.442695
    %v1685 = vpow.pop %v1684
    %v1686 = vadd.f32 %v1681, 1.0
    %v1687 = vadd.f32 %v1683, 1.0
    %v1688 = vadd.f32 %v1685, 1.0
    %v1689 = vrcp.pop %v1686
    %v1690 = vmul.f32 1.0, %v1689
    %v1691 = vrcp.pop %v1687
    %v1692 = vmul.f32 1.0, %v1691
    %v1693 = vrcp.pop %v1688
    %v1694 = vmul.f32 1.0, %v1693
    %v1695 = vtanh.pop %v1676
    %v1696 = vmul.f32 %v1692, %v1523
    %v1697 = vmul.f32 %v1690, %v1695
    %v1698 = vadd.f32 %v1696, %v1697
    %v1699 = vtanh.pop %v1698
    %v1700 = vmul.f32 %v1694, %v1699
    %s1701 = scalar_lea.vmem [#allocation2], 224
    %v1702 = vld [vmem:[%s1701] sm:$0xff]
    %v1703 = vld [vmem:[%s1701 + $0x8] sm:$0xff]
    %v1704 = vld [vmem:[%s1701 + $0x10] sm:$0xff]
    %v1705 = vld [vmem:[%s1701 + $0x18] sm:$0xff]
    %1706 = vmatprep.subr.mxu0 %v418
    %1707 = vmatpush1.msra.mxu0 %v417
    %1708 = vmatprep.subr.mxu0 %v422
    %1709 = vmatpush1.msra.mxu0 %v421
    %1710 = vmatprep.subr.mxu0 %v426
    %1711 = vmatpush1.msra.mxu0 %v425
    %1712 = vmatprep.subr.mxu0 %v430
    %1713 = vmatpush1.msra.mxu0 %v429
    %1714 = vmatprep.subr.mxu0 %v434
    %1715 = vmatpush1.msra.mxu0 %v433
    %1716 = vmatprep.subr.mxu0 %v438
    %1717 = vmatpush1.msra.mxu0 %v437
    %1718 = vmatprep.subr.mxu0 %v442
    %1719 = vmatpush1.msra.mxu0 %v441
    %1720 = vmatprep.subr.mxu0 %v446
    %1721 = vmatpush1.msra.mxu0 %v445
    %1722 = vmatprep.subr.mxu0 %v450
    %1723 = vmatpush1.msra.mxu0 %v449
    %1724 = vmatprep.subr.mxu0 %v454
    %1725 = vmatpush1.msra.mxu0 %v453
    %1726 = vmatprep.subr.mxu0 %v458
    %1727 = vmatpush1.msra.mxu0 %v457
    %1728 = vmatprep.subr.mxu0 %v462
    %1729 = vmatpush1.msra.mxu0 %v461
    %1730 = vmatprep.subr.mxu0 %v466
    %1731 = vmatpush1.msra.mxu0 %v465
    %1732 = vmatprep.subr.mxu0 %v470
    %1733 = vmatpush1.msra.mxu0 %v469
    %1734 = vmatprep.subr.mxu0 %v474
    %1735 = vmatpush1.msra.mxu0 %v473
    %1736 = vmatprep.subr.mxu0 %v478
    %1737 = vmatpush1.msra.mxu0 %v477
    %1738 = vmatprep.subr.mxu0 0.0
    %1739 = vmatpush1.msra.mxu0 0.0
    %1740 = vmatprep.subr.mxu0 0.0
    %1741 = vmatpush1.msra.mxu0 0.0
    %1742 = vmatprep.subr.mxu0 0.0
    %1743 = vmatpush1.msra.mxu0 0.0
    %1744 = vmatprep.subr.mxu0 0.0
    %1745 = vmatpush1.msra.mxu0 0.0
    %1746 = vmatprep.subr.mxu0 0.0
    %1747 = vmatpush1.msra.mxu0 0.0
    %1748 = vmatprep.subr.mxu0 0.0
    %1749 = vmatpush1.msra.mxu0 0.0
    %1750 = vmatprep.subr.mxu0 0.0
    %1751 = vmatpush1.msra.mxu0 0.0
    %1752 = vmatprep.subr.mxu0 0.0
    %1753 = vmatpush1.msra.mxu0 0.0
    %1754 = vmatprep.subr.mxu0 0.0
    %1755 = vmatpush1.msra.mxu0 0.0
    %1756 = vmatprep.subr.mxu0 0.0
    %1757 = vmatpush1.msra.mxu0 0.0
    %1758 = vmatprep.subr.mxu0 0.0
    %1759 = vmatpush1.msra.mxu0 0.0
    %1760 = vmatprep.subr.mxu0 0.0
    %1761 = vmatpush1.msra.mxu0 0.0
    %1762 = vmatprep.subr.mxu0 0.0
    %1763 = vmatpush1.msra.mxu0 0.0
    %1764 = vmatprep.subr.mxu0 0.0
    %1765 = vmatpush1.msra.mxu0 0.0
    %1766 = vmatprep.subr.mxu0 0.0
    %1767 = vmatpush1.msra.mxu0 0.0
    %1768 = vmatprep.subr.mxu0 0.0
    %1769 = vmatpush1.msra.mxu0 0.0
    %1770 = vmatprep.mubr.f32.mxu0 0.0
    %1771 = vmatmul.mubr.f32.gmra.mrb[0].mxu0 %v1700
    %v1772 = vpop.f32.mrb[0].mxu0
    %v1773 = vadd.f32 0.0, %v1772
    %v1774 = vpop.f32.mrb[0].mxu0
    %v1775 = vadd.f32 0.0, %v1774
    %1776 = vdwg.mxu0
    %1777 = vmatprep.subr.mxu0 %v420
    %1778 = vmatpush1.msra.mxu0 %v419
    %1779 = vmatprep.subr.mxu0 %v424
    %1780 = vmatpush1.msra.mxu0 %v423
    %1781 = vmatprep.subr.mxu0 %v428
    %1782 = vmatpush1.msra.mxu0 %v427
    %1783 = vmatprep.subr.mxu0 %v432
    %1784 = vmatpush1.msra.mxu0 %v431
    %1785 = vmatprep.subr.mxu0 %v436
    %1786 = vmatpush1.msra.mxu0 %v435
    %1787 = vmatprep.subr.mxu0 %v440
    %1788 = vmatpush1.msra.mxu0 %v439
    %1789 = vmatprep.subr.mxu0 %v444
    %1790 = vmatpush1.msra.mxu0 %v443
    %1791 = vmatprep.subr.mxu0 %v448
    %1792 = vmatpush1.msra.mxu0 %v447
    %1793 = vmatprep.subr.mxu0 %v452
    %1794 = vmatpush1.msra.mxu0 %v451
    %1795 = vmatprep.subr.mxu0 %v456
    %1796 = vmatpush1.msra.mxu0 %v455
    %1797 = vmatprep.subr.mxu0 %v460
    %1798 = vmatpush1.msra.mxu0 %v459
    %1799 = vmatprep.subr.mxu0 %v464
    %1800 = vmatpush1.msra.mxu0 %v463
    %1801 = vmatprep.subr.mxu0 %v468
    %1802 = vmatpush1.msra.mxu0 %v467
    %1803 = vmatprep.subr.mxu0 %v472
    %1804 = vmatpush1.msra.mxu0 %v471
    %1805 = vmatprep.subr.mxu0 %v476
    %1806 = vmatpush1.msra.mxu0 %v475
    %1807 = vmatprep.subr.mxu0 %v480
    %1808 = vmatpush1.msra.mxu0 %v479
    %1809 = vmatprep.subr.mxu0 0.0
    %1810 = vmatpush1.msra.mxu0 0.0
    %1811 = vmatprep.subr.mxu0 0.0
    %1812 = vmatpush1.msra.mxu0 0.0
    %1813 = vmatprep.subr.mxu0 0.0
    %1814 = vmatpush1.msra.mxu0 0.0
    %1815 = vmatprep.subr.mxu0 0.0
    %1816 = vmatpush1.msra.mxu0 0.0
    %1817 = vmatprep.subr.mxu0 0.0
    %1818 = vmatpush1.msra.mxu0 0.0
    %1819 = vmatprep.subr.mxu0 0.0
    %1820 = vmatpush1.msra.mxu0 0.0
    %1821 = vmatprep.subr.mxu0 0.0
    %1822 = vmatpush1.msra.mxu0 0.0
    %1823 = vmatprep.subr.mxu0 0.0
    %1824 = vmatpush1.msra.mxu0 0.0
    %1825 = vmatprep.subr.mxu0 0.0
    %1826 = vmatpush1.msra.mxu0 0.0
    %1827 = vmatprep.subr.mxu0 0.0
    %1828 = vmatpush1.msra.mxu0 0.0
    %1829 = vmatprep.subr.mxu0 0.0
    %1830 = vmatpush1.msra.mxu0 0.0
    %1831 = vmatprep.subr.mxu0 0.0
    %1832 = vmatpush1.msra.mxu0 0.0
    %1833 = vmatprep.subr.mxu0 0.0
    %1834 = vmatpush1.msra.mxu0 0.0
    %1835 = vmatprep.subr.mxu0 0.0
    %1836 = vmatpush1.msra.mxu0 0.0
    %1837 = vmatprep.subr.mxu0 0.0
    %1838 = vmatpush1.msra.mxu0 0.0
    %1839 = vmatprep.subr.mxu0 0.0
    %1840 = vmatpush1.msra.mxu0 0.0
    %1841 = vmatprep.mubr.f32.mxu0 0.0
    %1842 = vmatmul.mubr.f32.gmra.mrb[0].mxu0 %v1700
    %v1843 = vpop.f32.mrb[0].mxu0
    %v1844 = vadd.f32 0.0, %v1843
    %v1845 = vpop.f32.mrb[0].mxu0
    %v1846 = vadd.f32 0.0, %v1845
    %1847 = vdwg.mxu0
    %v1848 = vadd.f32 %v1702, %v1773
    %v1849 = vadd.f32 %v1703, %v1775
    %v1850 = vadd.f32 %v1704, %v1844
    %v1851 = vadd.f32 %v1705, %v1846
    %v1852 = vxor.u32 %v1848, 2147483648
    %v1853 = vxor.u32 %v1849, 2147483648
    %v1854 = vxor.u32 %v1850, 2147483648
    %v1855 = vmul.f32 %v1852, 1.442695
    %v1856 = vpow.pop %v1855
    %v1857 = vmul.f32 %v1853, 1.442695
    %v1858 = vpow.pop %v1857
    %v1859 = vmul.f32 %v1854, 1.442695
    %v1860 = vpow.pop %v1859
    %v1861 = vadd.f32 %v1856, 1.0
    %v1862 = vadd.f32 %v1858, 1.0
    %v1863 = vadd.f32 %v1860, 1.0
    %v1864 = vrcp.pop %v1861
    %v1865 = vmul.f32 1.0, %v1864
    %v1866 = vrcp.pop %v1862
    %v1867 = vmul.f32 1.0, %v1866
    %v1868 = vrcp.pop %v1863
    %v1869 = vmul.f32 1.0, %v1868
    %v1870 = vtanh.pop %v1851
    %v1871 = vmul.f32 %v1867, %v1698
    %v1872 = vmul.f32 %v1865, %v1870
    %v1873 = vadd.f32 %v1871, %v1872
    %v1874 = vtanh.pop %v1873
    %v1875 = vmul.f32 %v1869, %v1874
    %s1876 = smul.u32 128, 1
    %s1877 = sshll.u32 %s1876, 4
    %1878 = dma.done %s45, %s1877
    %v1879 = vld [vmem:[#allocation4] sm:$0xff]
    %v1880 = vld [vmem:[#allocation4 + $0x8] sm:$0xff]
    %v1881 = vld [vmem:[#allocation4 + $0x10] sm:$0xff]
    %v1882 = vld [vmem:[#allocation4 + $0x18] sm:$0xff]
    %v1883 = vld [vmem:[#allocation4 + $0x20] sm:$0xff]
    %v1884 = vld [vmem:[#allocation4 + $0x28] sm:$0xff]
    %v1885 = vld [vmem:[#allocation4 + $0x30] sm:$0xff]
    %v1886 = vld [vmem:[#allocation4 + $0x38] sm:$0xff]
    %v1887 = vld [vmem:[#allocation4 + $0x40] sm:$0xff]
    %v1888 = vld [vmem:[#allocation4 + $0x48] sm:$0xff]
    %v1889 = vld [vmem:[#allocation4 + $0x50] sm:$0xff]
    %v1890 = vld [vmem:[#allocation4 + $0x58] sm:$0xff]
    %v1891 = vld [vmem:[#allocation4 + $0x60] sm:$0xff]
    %v1892 = vld [vmem:[#allocation4 + $0x68] sm:$0xff]
    %v1893 = vld [vmem:[#allocation4 + $0x70] sm:$0xff]
    %v1894 = vld [vmem:[#allocation4 + $0x78] sm:$0xff]
    %v1895 = vld [vmem:[%s5] sm:$0x1]
    %v1897 = vlaneseq
    %v1898 = vshrl.u32 %v1897, 7
    %v1899 = vsub.s32 0, %v1898
    %v1900 = vrot.slane %v1895, %v1899
    %1902 = vmatprep.subr.mxu0 0.0
    %1903 = vmatpush1.msra.mxu0 %v1879
    %1904 = vmatprep.subr.mxu0 0.0
    %1905 = vmatpush1.msra.mxu0 %v1880
    %1906 = vmatprep.subr.mxu0 0.0
    %1907 = vmatpush1.msra.mxu0 %v1881
    %1908 = vmatprep.subr.mxu0 0.0
    %1909 = vmatpush1.msra.mxu0 %v1882
    %1910 = vmatprep.subr.mxu0 0.0
    %1911 = vmatpush1.msra.mxu0 %v1883
    %1912 = vmatprep.subr.mxu0 0.0
    %1913 = vmatpush1.msra.mxu0 %v1884
    %1914 = vmatprep.subr.mxu0 0.0
    %1915 = vmatpush1.msra.mxu0 %v1885
    %1916 = vmatprep.subr.mxu0 0.0
    %1917 = vmatpush1.msra.mxu0 %v1886
    %1918 = vmatprep.subr.mxu0 0.0
    %1919 = vmatpush1.msra.mxu0 %v1887
    %1920 = vmatprep.subr.mxu0 0.0
    %1921 = vmatpush1.msra.mxu0 %v1888
    %1922 = vmatprep.subr.mxu0 0.0
    %1923 = vmatpush1.msra.mxu0 %v1889
    %1924 = vmatprep.subr.mxu0 0.0
    %1925 = vmatpush1.msra.mxu0 %v1890
    %1926 = vmatprep.subr.mxu0 0.0
    %1927 = vmatpush1.msra.mxu0 %v1891
    %1928 = vmatprep.subr.mxu0 0.0
    %1929 = vmatpush1.msra.mxu0 %v1892
    %1930 = vmatprep.subr.mxu0 0.0
    %1931 = vmatpush1.msra.mxu0 %v1893
    %1932 = vmatprep.subr.mxu0 0.0
    %1933 = vmatpush1.msra.mxu0 %v1894
    %1934 = vmatprep.subr.mxu0 0.0
    %1935 = vmatpush1.msra.mxu0 0.0
    %1936 = vmatprep.subr.mxu0 0.0
    %1937 = vmatpush1.msra.mxu0 0.0
    %1938 = vmatprep.subr.mxu0 0.0
    %1939 = vmatpush1.msra.mxu0 0.0
    %1940 = vmatprep.subr.mxu0 0.0
    %1941 = vmatpush1.msra.mxu0 0.0
    %1942 = vmatprep.subr.mxu0 0.0
    %1943 = vmatpush1.msra.mxu0 0.0
    %1944 = vmatprep.subr.mxu0 0.0
    %1945 = vmatpush1.msra.mxu0 0.0
    %1946 = vmatprep.subr.mxu0 0.0
    %1947 = vmatpush1.msra.mxu0 0.0
    %1948 = vmatprep.subr.mxu0 0.0
    %1949 = vmatpush1.msra.mxu0 0.0
    %1950 = vmatprep.subr.mxu0 0.0
    %1951 = vmatpush1.msra.mxu0 0.0
    %1952 = vmatprep.subr.mxu0 0.0
    %1953 = vmatpush1.msra.mxu0 0.0
    %1954 = vmatprep.subr.mxu0 0.0
    %1955 = vmatpush1.msra.mxu0 0.0
    %1956 = vmatprep.subr.mxu0 0.0
    %1957 = vmatpush1.msra.mxu0 0.0
    %1958 = vmatprep.subr.mxu0 0.0
    %1959 = vmatpush1.msra.mxu0 0.0
    %1960 = vmatprep.subr.mxu0 0.0
    %1961 = vmatpush1.msra.mxu0 0.0
    %1962 = vmatprep.subr.mxu0 0.0
    %1963 = vmatpush1.msra.mxu0 0.0
    %1964 = vmatprep.subr.mxu0 0.0
    %1965 = vmatpush1.msra.mxu0 0.0
    %1966 = vmatprep.mubr.f32.mxu0 0.0
    %1967 = vmatmul.mubr.f32.gmra.mrb[0].mxu0 %v1875
    %v1968 = vpop.f32.mrb[0].mxu0
    %v1969 = vadd.f32 %v1900, %v1968
    %v1970 = vpop.f32.mrb[0].mxu0
    %1971 = vdwg.mxu0
    %1972 = vst [vmem:[#allocation9] sm:$0xff] %v1969
    // Predicated region
    $region30: #{_lstm_call.1} parent=1 // pred_check
      _
    $region31: #{_lstm_call.1} parent=1 // pred_check_branch
      %1974 = sbr.rel (0) target = $region33
    $region32: #{_lstm_call.1} parent=1 // pred_region
      %s1976 = ssub.s32 128, 128
      %1977 = vsyncadd [#allocation8], %s1976
      %s1979 = sshll.u32 [#allocation9], 4
      %s1980 = int_to_ptr.vmem [resolvable:$true] %s1979
      %1982 = dma.vmem_to_hbm [thread:$0]  %s1980, 128, %s6, [#allocation8]
    $region33: #{_lstm_call.1} parent=1 // pred_fallthru
      _
    // Predicated region
    $region34: #{_lstm_call.1} parent=1 // pred_check
      _
    $region35: #{_lstm_call.1} parent=1 // pred_check_branch
      %1984 = sbr.rel (0) target = $region37
    $region36: #{_lstm_call.1} parent=1 // pred_region
      %1985 = dma.done [#allocation8], 128
    $region37: #{_lstm_call.1} parent=1 // pred_fallthru
      _
    %1986 = vsyncpa [#allocation7], 1
    %1987 = vsyncpa [#allocation8], 1
  %1988 = vsyncmov [#allocation5]
  %s1989 = vpop.sfrf %1988
  %p1990 = scmp.eq.s32.totalorder %s1989, 0
  %p1991 = pneg %p1990
  %1993 = shalt.err (%p1991)
  %s1994 = scalar_lea.sflag [#allocation5], 1
  %1995 = vsyncmov %s1994
  %s1996 = vpop.sfrf %1995
  %p1997 = scmp.eq.s32.totalorder %s1996, 0
  %p1998 = pneg %p1997
  %2000 = shalt.err (%p1998)

</llo_original>
